<compile_context>
chip_gen: v5e
topology: v5e:2x2
jax: 0.10.0
libtpu: 0.0.40
codegen_flags: <defaults>
</compile_context>

<pallas_src>
import jax
import jax.numpy as jnp
from jax.experimental import pallas as pl
from jax.experimental.pallas import tpu as pltpu


# -inf stand-in for masked-out pooling neighbours.  Python float => jaxpr
# literal (a jnp scalar here would be a captured constant -> pallas_call error).
# It only ever replaces neighbours rejected by the validity masks; the
# un-shifted centre value is never masked, so the sentinel cannot leak out.
_NEG = -3.0e38


def _pick_row_tile(H, W, halo):
    """Row-tile height TH: a divisor of H with TH >= halo (so a +-1-tile window
    covers the pooling halo), preferring lane-aligned tiles (TH*W % 128 == 0)
    and then the smallest such tile (more grid steps => pipelining/megacore).
    Falls back to TH = H (single tile) when no divisor in [halo, H) exists."""
    divisors = [d for d in range(1, H + 1) if H % d == 0]
    cands = [d for d in divisors if halo <= d < H] or [H]
    return min(cands, key=lambda d: ((d * W) % 128 != 0, d))


def _make_spp_kernel(C1, C_, C2, H, W, TH, pool_incs, on_tpu):
    TW = TH * W            # lanes per row tile
    Wn = 3 * TW            # lanes per window (prev | cur | next tile)
    max_p = max(inc // 2 for inc in pool_incs)
    ctr = slice(TW, 2 * TW)                    # central (output) rows

    def cshift(x, s):
        # Circular lane shift: pltpu.roll (XLU, nearly free slot) on real TPUs,
        # static slice+concat fallback elsewhere (e.g. interpret mode).  The
        # masks below are built with the *same* helper, so correctness does not
        # depend on the roll direction convention.
        s = s % Wn
        if s == 0:
            return x
        if on_tpu:
            return pltpu.roll(x, s, 1)
        return jnp.concatenate([x[:, Wn - s:], x[:, :Wn - s]], axis=1)

    def kernel(lrow_ref, xp_ref, xc_ref, xn_ref,
               w1_ref, s1_ref, b1_ref, w2s_ref, s2_ref, b2_ref, o_ref):
        t = pl.program_id(1)

        # ---- per-lane row labels for the 3-tile window ---------------------
        g = lrow_ref[...] + (t - 1) * TH                 # global image row
        valid = (g >= 0) & (g < H)
        # Out-of-image rows (clamped prev/next duplicates at the image edges)
        # get far-away, per-row-unique labels so every neighbour test below
        # rejects them.  This also removes the wrap/sign aliasing hazard: the
        # window always holds >= 3 distinct rows, so |delta| == d (d <= 2) can
        # never be produced by a window wrap-around.
        label = jnp.where(valid, g, -(1 << 20) - g)      # (1, Wn) int32

        # ---- neighbour-validity masks, (1, Wn), shared by all chained pools -
        hmask, vmask = {}, {}
        for d in range(1, max_p + 1):
            hm, vm = [], []
            for s in (d, Wn - d):                        # horizontal +-d cols
                hm.append((s, cshift(label, s) == label))      # same image row
            for s in (d * W, Wn - d * W):                # vertical   +-d rows
                delta = cshift(label, s) - label
                vm.append((s, (delta == d) | (delta == -d)))   # genuine +-d
            hmask[d], vmask[d] = hm, vm

        def pool_same(y, k):
            """stride-1 / -inf-'same'-padded k x k max pool on the window."""
            p = k // 2
            h = y                                        # horizontal (W) pass
            for d in range(1, p + 1):
                for s, m in hmask[d]:
                    h = jnp.maximum(h, jnp.where(m, cshift(y, s), _NEG))
            v = h                                        # vertical (H) pass
            for d in range(1, p + 1):
                for s, m in vmask[d]:
                    v = jnp.maximum(v, jnp.where(m, cshift(h, s), _NEG))
            return v

        # ---- cv1: 1x1 conv (bf16 MXU, f32 accum) + folded BN + SiLU --------
        xw = jnp.concatenate([xp_ref[0], xc_ref[0], xn_ref[0]], axis=1)  # (C1, Wn) bf16
        y1 = jnp.dot(w1_ref[...], xw, preferred_element_type=jnp.float32)
        y1 = y1 * s1_ref[...] + b1_ref[...]
        y1 = y1 * jax.nn.sigmoid(y1)                     # SiLU
        y1 = y1.astype(jnp.bfloat16)   # single cast: pooling + cv2 run in bf16
        # (on v5e bf16 pooling adds converts, but feats must be bf16 for the
        #  cv2 MXU dots anyway; on v6e/v7x it halves roll/max vreg traffic)

        # ---- SPP branches + cv2, accumulated incrementally ------------------
        acc = jnp.dot(w2s_ref[0], y1[:, ctr], preferred_element_type=jnp.float32)
        cur = y1
        for i, inc in enumerate(pool_incs):
            cur = pool_same(cur, inc)                    # chained 5x5 pools
            acc = acc + jnp.dot(w2s_ref[i + 1], cur[:, ctr],
                                preferred_element_type=jnp.float32)
        y2 = acc * s2_ref[...] + b2_ref[...]
        y2 = y2 * jax.nn.sigmoid(y2)
        o_ref[0] = y2.astype(o_ref.dtype)                # lane-dense store

    return kernel


def spp_forward(x, w1, g1, b1, rm1, rv1, w2, g2, b2, rm2, rv2,
                pool_ks=(5, 9, 13), eps=1e-5):
    """SPP.forward(x) with eval-mode (folded) BatchNorm.

    x : (N, C1, H, W) float32 (torch NCHW layout)
    w1: (C_, C1, 1, 1)                 cv1.conv.weight
    w2: (C2, C_*(len(pool_ks)+1), 1, 1) cv2.conv.weight
    g/b/rm/rv: BatchNorm weight / bias / running_mean / running_var
    """
    N, C1, H, W = x.shape
    C_ = w1.shape[0]
    C2 = w2.shape[0]
    nb = len(pool_ks) + 1
    assert w1.shape == (C_, C1, 1, 1)
    assert w2.shape == (C2, nb * C_, 1, 1)

    # maxpool_a o maxpool_b == maxpool_{a+b-1} for stride-1 / -inf padding, so
    # the (5, 9, 13) pyramid is computed as a chain of smaller pools.
    incs, prev = [], 1
    for k in pool_ks:
        inc = k - prev + 1
        assert inc >= 3 and inc % 2 == 1, "pool sizes must be odd and increasing"
        incs.append(inc)
        prev = k
    halo = sum(inc // 2 for inc in incs)      # rows of context needed (6)

    TH = _pick_row_tile(H, W, halo)
    T = H // TH
    TW = TH * W
    assert TH >= halo or T == 1

    # Folded BN (eval mode / running statistics), f32, shaped for lane broadcast.
    s1v = (g1 / jnp.sqrt(rv1 + eps)).astype(jnp.float32)
    s2v = (g2 / jnp.sqrt(rv2 + eps)).astype(jnp.float32)
    bb1 = (b1 - rm1 * s1v).reshape(C_, 1).astype(jnp.float32)
    bb2 = (b2 - rm2 * s2v).reshape(C2, 1).astype(jnp.float32)
    s1 = s1v.reshape(C_, 1)
    s2 = s2v.reshape(C2, 1)

    # bf16 matmul operands (full-rate MXU on v5e/v6e/v7x); accumulation is f32.
    w1_b = w1.reshape(C_, C1).astype(jnp.bfloat16)
    w2s_b = jnp.transpose(w2.reshape(C2, nb, C_), (1, 0, 2)).astype(jnp.bfloat16)
    # x flattened onto one lane-dense axis and stored bf16 (read ~3x by the
    # overlapping row windows, so this halves the dominant input DMA).
    x_flat = x.reshape(N, C1, H * W).astype(jnp.bfloat16)

    # Tiny resident row map: lane j of the window -> local window row j // W.
    lrow = (jnp.arange(3 * TW, dtype=jnp.int32) // W).reshape(1, 3 * TW)

    on_tpu = any(d.platform == "tpu" for d in jax.devices())
    kernel = _make_spp_kernel(C1, C_, C2, H, W, TH, tuple(incs), on_tpu)

    flops = 2 * N * H * W * (3 * C1 * C_ + nb * C_ * C2)
    bytes_accessed = (2 * N * 3 * C1 * H * W     # x window reads (bf16, 3x)
                      + 4 * N * C2 * H * W       # f32 output
                      + 2 * (C_ * C1 + nb * C2 * C_) + 4 * 3 * TW)
    last = T - 1

    out_flat = pl.pallas_call(
        kernel,
        out_shape=jax.ShapeDtypeStruct((N, C2, H * W), jnp.float32),
        grid_spec=pltpu.PrefetchScalarGridSpec(
            num_scalar_prefetch=0,
            grid=(N, T),                                  # batch x row tiles
            in_specs=[
                pl.BlockSpec((1, 3 * TW), lambda n, t: (0, 0)),          # row map
                pl.BlockSpec((1, C1, TW),                                # x prev
                             lambda n, t: (n, 0, jnp.maximum(t - 1, 0))),
                pl.BlockSpec((1, C1, TW), lambda n, t: (n, 0, t)),       # x cur
                pl.BlockSpec((1, C1, TW),                                # x next
                             lambda n, t: (n, 0, jnp.minimum(t + 1, last))),
                pl.BlockSpec((C_, C1), lambda n, t: (0, 0)),             # cv1 w (bf16)
                pl.BlockSpec((C_, 1), lambda n, t: (0, 0)),              # cv1 BN scale
                pl.BlockSpec((C_, 1), lambda n, t: (0, 0)),              # cv1 BN bias
                pl.BlockSpec((nb, C2, C_), lambda n, t: (0, 0, 0)),      # cv2 w (bf16)
                pl.BlockSpec((C2, 1), lambda n, t: (0, 0)),              # cv2 BN scale
                pl.BlockSpec((C2, 1), lambda n, t: (0, 0)),              # cv2 BN bias
            ],
            out_specs=pl.BlockSpec((1, C2, TW), lambda n, t: (n, 0, t)),
        ),
        compiler_params=pltpu.CompilerParams(
            dimension_semantics=("parallel", "parallel"),   # megacore-friendly
            vmem_limit_bytes=48 * 1024 * 1024),             # v7x-safe (< 64 MiB)
        cost_estimate=pl.CostEstimate(
            flops=flops,
            transcendentals=N * H * W * (3 * C_ + C2),
            bytes_accessed=bytes_accessed),
    )(lrow, x_flat, x_flat, x_flat, w1_b, s1, bb1, w2s_b, s2, bb2)

    # Note: if an xprof trace shows exposed input DMA at small tiles, deepen the
    # x specs with pipeline_mode=pl.Buffered(3); output could also be emitted as
    # bf16 if downstream tolerates it (kept f32 here for module fidelity).
    return out_flat.reshape(N, C2, H, W)


if __name__ == "__main__":
    key = jax.random.PRNGKey(0)
    ks = jax.random.split(key, 11)

    # SPP(c1=4, c2=8) at a small spatial size: x (2, 4, 16, 16); c_ = c1 // 2 = 2.
    N, C1, H, W = 2, 4, 16, 16
    C2 = 8
    C_ = C1 // 2
    pool_ks = (5, 9, 13)
    nb = len(pool_ks) + 1

    x = jax.random.normal(ks[0], (N, C1, H, W), dtype=jnp.float32)

    w1 = jax.random.normal(ks[1], (C_, C1, 1, 1), dtype=jnp.float32) * 0.5
    g1 = 1.0 + 0.1 * jax.random.normal(ks[2], (C_,), dtype=jnp.float32)
    b1 = 0.1 * jax.random.normal(ks[3], (C_,), dtype=jnp.float32)
    rm1 = 0.1 * jax.random.normal(ks[4], (C_,), dtype=jnp.float32)
    rv1 = jax.nn.softplus(jax.random.normal(ks[5], (C_,), dtype=jnp.float32)) + 0.5

    w2 = jax.random.normal(ks[6], (C2, nb * C_, 1, 1), dtype=jnp.float32) * 0.3
    g2 = 1.0 + 0.1 * jax.random.normal(ks[7], (C2,), dtype=jnp.float32)
    b2 = 0.1 * jax.random.normal(ks[8], (C2,), dtype=jnp.float32)
    rm2 = 0.1 * jax.random.normal(ks[9], (C2,), dtype=jnp.float32)
    rv2 = jax.nn.softplus(jax.random.normal(ks[10], (C2,), dtype=jnp.float32)) + 0.5

    out = spp_forward(x, w1, g1, b1, rm1, rv1, w2, g2, b2, rm2, rv2, pool_ks)
    jax.block_until_ready(out)

    # ---- pure-JAX f32 reference of SPP.forward (eval-mode BN folding) ----
    def conv_bn_silu_ref(xx, w, g, b, rm, rv, eps=1e-5):
        y = jax.lax.conv_general_dilated(
            xx, w, window_strides=(1, 1), padding="SAME",
            dimension_numbers=("NCHW", "OIHW", "NCHW"))
        s = g / jnp.sqrt(rv + eps)
        y = y * s[None, :, None, None] + (b - rm * s)[None, :, None, None]
        return y * jax.nn.sigmoid(y)

    def maxpool_ref(xx, k):
        p = k // 2
        return jax.lax.reduce_window(
            xx, -jnp.inf, jax.lax.max, (1, 1, k, k), (1, 1, 1, 1),
            [(0, 0), (0, 0), (p, p), (p, p)])

    y1 = conv_bn_silu_ref(x, w1, g1, b1, rm1, rv1)
    cat = jnp.concatenate([y1] + [maxpool_ref(y1, k) for k in pool_ks], axis=1)
    ref = conv_bn_silu_ref(cat, w2, g2, b2, rm2, rv2)

    assert out.shape == (N, C2, H, W)
    # bf16 matmul operands => expect ~1e-2-level deviation from the f32
    # reference (per the perf review); tolerance is loosened accordingly.
    err = float(jnp.max(jnp.abs(out - ref)))
    tol = 3e-2 * max(1.0, float(jnp.max(jnp.abs(ref))))
    assert err < tol, (err, tol)
    print("KERNEL_OK")
</pallas_src>

<mosaic_0001>
module attributes {stable_mosaic.version = 11 : i64} {
  func.func @kernel(%arg0: i32, %arg1: i32, %arg2: memref<1x384xi32, #tpu.memory_space<vmem>>, %arg3: memref<1x4x128xbf16, #tpu.memory_space<vmem>>, %arg4: memref<1x4x128xbf16, #tpu.memory_space<vmem>>, %arg5: memref<1x4x128xbf16, #tpu.memory_space<vmem>>, %arg6: memref<2x4xbf16, #tpu.memory_space<vmem>>, %arg7: memref<2x1xf32, #tpu.memory_space<vmem>>, %arg8: memref<2x1xf32, #tpu.memory_space<vmem>>, %arg9: memref<4x8x2xbf16, #tpu.memory_space<vmem>>, %arg10: memref<8x1xf32, #tpu.memory_space<vmem>>, %arg11: memref<8x1xf32, #tpu.memory_space<vmem>>, %arg12: memref<1x8x128xf32, #tpu.memory_space<vmem>>) attributes {dimension_semantics = [#tpu.dimension_semantics<parallel>, #tpu.dimension_semantics<parallel>], iteration_bounds = array<i64: 2, 2>, scalar_prefetch = 0 : i64, scratch_operands = 0 : i64, tpu.core_type = #tpu.core_type<tc>, window_params = [{pipeline_mode = #tpu.pipeline_mode<synchronous>, transform_indices = @transform_0, window_bounds = array<i64: 1, 384>}, {transform_indices = @transform_1, window_bounds = array<i64: 1, 4, 128>}, {transform_indices = @transform_2, window_bounds = array<i64: 1, 4, 128>}, {transform_indices = @transform_3, window_bounds = array<i64: 1, 4, 128>}, {pipeline_mode = #tpu.pipeline_mode<synchronous>, transform_indices = @transform_4, window_bounds = array<i64: 2, 4>}, {pipeline_mode = #tpu.pipeline_mode<synchronous>, transform_indices = @transform_5, window_bounds = array<i64: 2, 1>}, {pipeline_mode = #tpu.pipeline_mode<synchronous>, transform_indices = @transform_6, window_bounds = array<i64: 2, 1>}, {pipeline_mode = #tpu.pipeline_mode<synchronous>, transform_indices = @transform_7, window_bounds = array<i64: 4, 8, 2>}, {pipeline_mode = #tpu.pipeline_mode<synchronous>, transform_indices = @transform_8, window_bounds = array<i64: 8, 1>}, {pipeline_mode = #tpu.pipeline_mode<synchronous>, transform_indices = @transform_9, window_bounds = array<i64: 8, 1>}, {transform_indices = @transform_10, window_bounds = array<i64: 1, 8, 128>}]} {
    %c0 = arith.constant 0 : index
    %c0_0 = arith.constant 0 : index
    %0 = vector.load %arg2[%c0, %c0_0] : memref<1x384xi32, #tpu.memory_space<vmem>>, vector<1x384xi32>
    %c1_i32 = arith.constant 1 : i32
    %1 = arith.subi %arg1, %c1_i32 : i32
    %c8_i32 = arith.constant 8 : i32
    %2 = arith.muli %1, %c8_i32 : i32
    %3 = vector.broadcast %2 : i32 to vector<1x384xi32>
    %4 = arith.addi %0, %3 : vector<1x384xi32>
    %c0_i32 = arith.constant 0 : i32
    %5 = vector.broadcast %c0_i32 : i32 to vector<1x384xi32>
    %6 = arith.cmpi sge, %4, %5 : vector<1x384xi32>
    %c16_i32 = arith.constant 16 : i32
    %7 = vector.broadcast %c16_i32 : i32 to vector<1x384xi32>
    %8 = arith.cmpi slt, %4, %7 : vector<1x384xi32>
    %9 = arith.andi %6, %8 : vector<1x384xi1>
    %c-1048576_i32 = arith.constant -1048576 : i32
    %10 = vector.broadcast %c-1048576_i32 : i32 to vector<1x384xi32>
    %11 = arith.subi %10, %4 : vector<1x384xi32>
    %12 = arith.select %9, %4, %11 : vector<1x384xi1>, vector<1x384xi32>
    %13 = vector.extract_strided_slice %12 {offsets = [0, 383], sizes = [1, 1], strides = [1, 1]} : vector<1x384xi32> to vector<1x1xi32>
    %14 = vector.extract_strided_slice %12 {offsets = [0, 0], sizes = [1, 383], strides = [1, 1]} : vector<1x384xi32> to vector<1x383xi32>
    %15 = tpu.concatenate %13, %14 in 1 : vector<1x1xi32>, vector<1x383xi32> -> vector<1x384xi32>
    %16 = arith.cmpi eq, %15, %12 : vector<1x384xi32>
    %17 = vector.extract_strided_slice %12 {offsets = [0, 1], sizes = [1, 383], strides = [1, 1]} : vector<1x384xi32> to vector<1x383xi32>
    %18 = vector.extract_strided_slice %12 {offsets = [0, 0], sizes = [1, 1], strides = [1, 1]} : vector<1x384xi32> to vector<1x1xi32>
    %19 = tpu.concatenate %17, %18 in 1 : vector<1x383xi32>, vector<1x1xi32> -> vector<1x384xi32>
    %20 = arith.cmpi eq, %19, %12 : vector<1x384xi32>
    %21 = vector.extract_strided_slice %12 {offsets = [0, 368], sizes = [1, 16], strides = [1, 1]} : vector<1x384xi32> to vector<1x16xi32>
    %22 = vector.extract_strided_slice %12 {offsets = [0, 0], sizes = [1, 368], strides = [1, 1]} : vector<1x384xi32> to vector<1x368xi32>
    %23 = tpu.concatenate %21, %22 in 1 : vector<1x16xi32>, vector<1x368xi32> -> vector<1x384xi32>
    %24 = arith.subi %23, %12 : vector<1x384xi32>
    %c1_i32_1 = arith.constant 1 : i32
    %25 = vector.broadcast %c1_i32_1 : i32 to vector<1x384xi32>
    %26 = arith.cmpi eq, %24, %25 : vector<1x384xi32>
    %c-1_i32 = arith.constant -1 : i32
    %27 = vector.broadcast %c-1_i32 : i32 to vector<1x384xi32>
    %28 = arith.cmpi eq, %24, %27 : vector<1x384xi32>
    %29 = arith.ori %26, %28 : vector<1x384xi1>
    %30 = vector.extract_strided_slice %12 {offsets = [0, 16], sizes = [1, 368], strides = [1, 1]} : vector<1x384xi32> to vector<1x368xi32>
    %31 = vector.extract_strided_slice %12 {offsets = [0, 0], sizes = [1, 16], strides = [1, 1]} : vector<1x384xi32> to vector<1x16xi32>
    %32 = tpu.concatenate %30, %31 in 1 : vector<1x368xi32>, vector<1x16xi32> -> vector<1x384xi32>
    %33 = arith.subi %32, %12 : vector<1x384xi32>
    %c1_i32_2 = arith.constant 1 : i32
    %34 = vector.broadcast %c1_i32_2 : i32 to vector<1x384xi32>
    %35 = arith.cmpi eq, %33, %34 : vector<1x384xi32>
    %c-1_i32_3 = arith.constant -1 : i32
    %36 = vector.broadcast %c-1_i32_3 : i32 to vector<1x384xi32>
    %37 = arith.cmpi eq, %33, %36 : vector<1x384xi32>
    %38 = arith.ori %35, %37 : vector<1x384xi1>
    %39 = vector.extract_strided_slice %12 {offsets = [0, 382], sizes = [1, 2], strides = [1, 1]} : vector<1x384xi32> to vector<1x2xi32>
    %40 = vector.extract_strided_slice %12 {offsets = [0, 0], sizes = [1, 382], strides = [1, 1]} : vector<1x384xi32> to vector<1x382xi32>
    %41 = tpu.concatenate %39, %40 in 1 : vector<1x2xi32>, vector<1x382xi32> -> vector<1x384xi32>
    %42 = arith.cmpi eq, %41, %12 : vector<1x384xi32>
    %43 = vector.extract_strided_slice %12 {offsets = [0, 2], sizes = [1, 382], strides = [1, 1]} : vector<1x384xi32> to vector<1x382xi32>
    %44 = vector.extract_strided_slice %12 {offsets = [0, 0], sizes = [1, 2], strides = [1, 1]} : vector<1x384xi32> to vector<1x2xi32>
    %45 = tpu.concatenate %43, %44 in 1 : vector<1x382xi32>, vector<1x2xi32> -> vector<1x384xi32>
    %46 = arith.cmpi eq, %45, %12 : vector<1x384xi32>
    %47 = vector.extract_strided_slice %12 {offsets = [0, 352], sizes = [1, 32], strides = [1, 1]} : vector<1x384xi32> to vector<1x32xi32>
    %48 = vector.extract_strided_slice %12 {offsets = [0, 0], sizes = [1, 352], strides = [1, 1]} : vector<1x384xi32> to vector<1x352xi32>
    %49 = tpu.concatenate %47, %48 in 1 : vector<1x32xi32>, vector<1x352xi32> -> vector<1x384xi32>
    %50 = arith.subi %49, %12 : vector<1x384xi32>
    %c2_i32 = arith.constant 2 : i32
    %51 = vector.broadcast %c2_i32 : i32 to vector<1x384xi32>
    %52 = arith.cmpi eq, %50, %51 : vector<1x384xi32>
    %c-2_i32 = arith.constant -2 : i32
    %53 = vector.broadcast %c-2_i32 : i32 to vector<1x384xi32>
    %54 = arith.cmpi eq, %50, %53 : vector<1x384xi32>
    %55 = arith.ori %52, %54 : vector<1x384xi1>
    %56 = vector.extract_strided_slice %12 {offsets = [0, 32], sizes = [1, 352], strides = [1, 1]} : vector<1x384xi32> to vector<1x352xi32>
    %57 = vector.extract_strided_slice %12 {offsets = [0, 0], sizes = [1, 32], strides = [1, 1]} : vector<1x384xi32> to vector<1x32xi32>
    %58 = tpu.concatenate %56, %57 in 1 : vector<1x352xi32>, vector<1x32xi32> -> vector<1x384xi32>
    %59 = arith.subi %58, %12 : vector<1x384xi32>
    %c2_i32_4 = arith.constant 2 : i32
    %60 = vector.broadcast %c2_i32_4 : i32 to vector<1x384xi32>
    %61 = arith.cmpi eq, %59, %60 : vector<1x384xi32>
    %c-2_i32_5 = arith.constant -2 : i32
    %62 = vector.broadcast %c-2_i32_5 : i32 to vector<1x384xi32>
    %63 = arith.cmpi eq, %59, %62 : vector<1x384xi32>
    %64 = arith.ori %61, %63 : vector<1x384xi1>
    %c0_6 = arith.constant 0 : index
    %c0_7 = arith.constant 0 : index
    %c0_8 = arith.constant 0 : index
    %65 = vector.load %arg3[%c0_6, %c0_7, %c0_8] : memref<1x4x128xbf16, #tpu.memory_space<vmem>>, vector<1x4x128xbf16>
    %66 = vector.shape_cast %65 : vector<1x4x128xbf16> to vector<4x128xbf16>
    %c0_9 = arith.constant 0 : index
    %c0_10 = arith.constant 0 : index
    %c0_11 = arith.constant 0 : index
    %67 = vector.load %arg4[%c0_9, %c0_10, %c0_11] : memref<1x4x128xbf16, #tpu.memory_space<vmem>>, vector<1x4x128xbf16>
    %68 = vector.shape_cast %67 : vector<1x4x128xbf16> to vector<4x128xbf16>
    %c0_12 = arith.constant 0 : index
    %c0_13 = arith.constant 0 : index
    %c0_14 = arith.constant 0 : index
    %69 = vector.load %arg5[%c0_12, %c0_13, %c0_14] : memref<1x4x128xbf16, #tpu.memory_space<vmem>>, vector<1x4x128xbf16>
    %70 = vector.shape_cast %69 : vector<1x4x128xbf16> to vector<4x128xbf16>
    %71 = tpu.concatenate %66, %68, %70 in 1 : vector<4x128xbf16>, vector<4x128xbf16>, vector<4x128xbf16> -> vector<4x384xbf16>
    %c0_15 = arith.constant 0 : index
    %c0_16 = arith.constant 0 : index
    %72 = vector.load %arg6[%c0_15, %c0_16] : memref<2x4xbf16, #tpu.memory_space<vmem>>, vector<2x4xbf16>
    %cst = arith.constant dense<0.000000e+00> : vector<2x384xf32>
    %73 = tpu.matmul %72, %71, %cst {dimension_numbers = #tpu.dot_dimension_numbers<[1], [0], [0], [1], [0, 0, 1, 1], [], []>} : vector<2x4xbf16>, vector<4x384xbf16>, vector<2x384xf32> -> vector<2x384xf32>
    %c0_17 = arith.constant 0 : index
    %c0_18 = arith.constant 0 : index
    %74 = vector.load %arg7[%c0_17, %c0_18] : memref<2x1xf32, #tpu.memory_space<vmem>>, vector<2x1xf32>
    %75 = vector.broadcast %74 : vector<2x1xf32> to vector<2x384xf32>
    %76 = arith.mulf %73, %75 : vector<2x384xf32>
    %c0_19 = arith.constant 0 : index
    %c0_20 = arith.constant 0 : index
    %77 = vector.load %arg8[%c0_19, %c0_20] : memref<2x1xf32, #tpu.memory_space<vmem>>, vector<2x1xf32>
    %78 = vector.broadcast %77 : vector<2x1xf32> to vector<2x384xf32>
    %79 = arith.addf %76, %78 : vector<2x384xf32>
    %80 = arith.negf %79 : vector<2x384xf32>
    %81 = math.exp %80 : vector<2x384xf32>
    %cst_21 = arith.constant 1.000000e+00 : f32
    %82 = vector.broadcast %cst_21 : f32 to vector<2x384xf32>
    %83 = arith.addf %82, %81 : vector<2x384xf32>
    %84 = arith.divf %82, %83 : vector<2x384xf32>
    %85 = arith.mulf %79, %84 : vector<2x384xf32>
    %86 = arith.truncf %85 : vector<2x384xf32> to vector<2x384xbf16>
    %c0_22 = arith.constant 0 : index
    %c0_23 = arith.constant 0 : index
    %c0_24 = arith.constant 0 : index
    %87 = vector.load %arg9[%c0_22, %c0_23, %c0_24] : memref<4x8x2xbf16, #tpu.memory_space<vmem>>, vector<1x8x2xbf16>
    %88 = vector.shape_cast %87 : vector<1x8x2xbf16> to vector<8x2xbf16>
    %89 = vector.extract_strided_slice %86 {offsets = [0, 128], sizes = [2, 128], strides = [1, 1]} : vector<2x384xbf16> to vector<2x128xbf16>
    %cst_25 = arith.constant dense<0.000000e+00> : vector<8x128xf32>
    %90 = tpu.matmul %88, %89, %cst_25 {dimension_numbers = #tpu.dot_dimension_numbers<[1], [0], [0], [1], [0, 0, 1, 1], [], []>} : vector<8x2xbf16>, vector<2x128xbf16>, vector<8x128xf32> -> vector<8x128xf32>
    %91 = vector.extract_strided_slice %86 {offsets = [0, 383], sizes = [2, 1], strides = [1, 1]} : vector<2x384xbf16> to vector<2x1xbf16>
    %92 = vector.extract_strided_slice %86 {offsets = [0, 0], sizes = [2, 383], strides = [1, 1]} : vector<2x384xbf16> to vector<2x383xbf16>
    %93 = tpu.concatenate %91, %92 in 1 : vector<2x1xbf16>, vector<2x383xbf16> -> vector<2x384xbf16>
    %cst_26 = arith.constant -3.000000e+38 : f32
    %94 = arith.truncf %cst_26 : f32 to bf16
    %95 = vector.shape_cast %16 : vector<1x384xi1> to vector<1x384xi1>
    %96 = vector.broadcast %95 : vector<1x384xi1> to vector<2x384xi1>
    %97 = vector.broadcast %94 : bf16 to vector<2x384xbf16>
    %98 = arith.select %96, %93, %97 : vector<2x384xi1>, vector<2x384xbf16>
    %99 = arith.maximumf %86, %98 : vector<2x384xbf16>
    %100 = vector.extract_strided_slice %86 {offsets = [0, 1], sizes = [2, 383], strides = [1, 1]} : vector<2x384xbf16> to vector<2x383xbf16>
    %101 = vector.extract_strided_slice %86 {offsets = [0, 0], sizes = [2, 1], strides = [1, 1]} : vector<2x384xbf16> to vector<2x1xbf16>
    %102 = tpu.concatenate %100, %101 in 1 : vector<2x383xbf16>, vector<2x1xbf16> -> vector<2x384xbf16>
    %cst_27 = arith.constant -3.000000e+38 : f32
    %103 = arith.truncf %cst_27 : f32 to bf16
    %104 = vector.shape_cast %20 : vector<1x384xi1> to vector<1x384xi1>
    %105 = vector.broadcast %104 : vector<1x384xi1> to vector<2x384xi1>
    %106 = vector.broadcast %103 : bf16 to vector<2x384xbf16>
    %107 = arith.select %105, %102, %106 : vector<2x384xi1>, vector<2x384xbf16>
    %108 = arith.maximumf %99, %107 : vector<2x384xbf16>
    %109 = vector.extract_strided_slice %86 {offsets = [0, 382], sizes = [2, 2], strides = [1, 1]} : vector<2x384xbf16> to vector<2x2xbf16>
    %110 = vector.extract_strided_slice %86 {offsets = [0, 0], sizes = [2, 382], strides = [1, 1]} : vector<2x384xbf16> to vector<2x382xbf16>
    %111 = tpu.concatenate %109, %110 in 1 : vector<2x2xbf16>, vector<2x382xbf16> -> vector<2x384xbf16>
    %cst_28 = arith.constant -3.000000e+38 : f32
    %112 = arith.truncf %cst_28 : f32 to bf16
    %113 = vector.shape_cast %42 : vector<1x384xi1> to vector<1x384xi1>
    %114 = vector.broadcast %113 : vector<1x384xi1> to vector<2x384xi1>
    %115 = vector.broadcast %112 : bf16 to vector<2x384xbf16>
    %116 = arith.select %114, %111, %115 : vector<2x384xi1>, vector<2x384xbf16>
    %117 = arith.maximumf %108, %116 : vector<2x384xbf16>
    %118 = vector.extract_strided_slice %86 {offsets = [0, 2], sizes = [2, 382], strides = [1, 1]} : vector<2x384xbf16> to vector<2x382xbf16>
    %119 = vector.extract_strided_slice %86 {offsets = [0, 0], sizes = [2, 2], strides = [1, 1]} : vector<2x384xbf16> to vector<2x2xbf16>
    %120 = tpu.concatenate %118, %119 in 1 : vector<2x382xbf16>, vector<2x2xbf16> -> vector<2x384xbf16>
    %cst_29 = arith.constant -3.000000e+38 : f32
    %121 = arith.truncf %cst_29 : f32 to bf16
    %122 = vector.shape_cast %46 : vector<1x384xi1> to vector<1x384xi1>
    %123 = vector.broadcast %122 : vector<1x384xi1> to vector<2x384xi1>
    %124 = vector.broadcast %121 : bf16 to vector<2x384xbf16>
    %125 = arith.select %123, %120, %124 : vector<2x384xi1>, vector<2x384xbf16>
    %126 = arith.maximumf %117, %125 : vector<2x384xbf16>
    %127 = vector.extract_strided_slice %126 {offsets = [0, 368], sizes = [2, 16], strides = [1, 1]} : vector<2x384xbf16> to vector<2x16xbf16>
    %128 = vector.extract_strided_slice %126 {offsets = [0, 0], sizes = [2, 368], strides = [1, 1]} : vector<2x384xbf16> to vector<2x368xbf16>
    %129 = tpu.concatenate %127, %128 in 1 : vector<2x16xbf16>, vector<2x368xbf16> -> vector<2x384xbf16>
    %cst_30 = arith.constant -3.000000e+38 : f32
    %130 = arith.truncf %cst_30 : f32 to bf16
    %131 = vector.shape_cast %29 : vector<1x384xi1> to vector<1x384xi1>
    %132 = vector.broadcast %131 : vector<1x384xi1> to vector<2x384xi1>
    %133 = vector.broadcast %130 : bf16 to vector<2x384xbf16>
    %134 = arith.select %132, %129, %133 : vector<2x384xi1>, vector<2x384xbf16>
    %135 = arith.maximumf %126, %134 : vector<2x384xbf16>
    %136 = vector.extract_strided_slice %126 {offsets = [0, 16], sizes = [2, 368], strides = [1, 1]} : vector<2x384xbf16> to vector<2x368xbf16>
    %137 = vector.extract_strided_slice %126 {offsets = [0, 0], sizes = [2, 16], strides = [1, 1]} : vector<2x384xbf16> to vector<2x16xbf16>
    %138 = tpu.concatenate %136, %137 in 1 : vector<2x368xbf16>, vector<2x16xbf16> -> vector<2x384xbf16>
    %cst_31 = arith.constant -3.000000e+38 : f32
    %139 = arith.truncf %cst_31 : f32 to bf16
    %140 = vector.shape_cast %38 : vector<1x384xi1> to vector<1x384xi1>
    %141 = vector.broadcast %140 : vector<1x384xi1> to vector<2x384xi1>
    %142 = vector.broadcast %139 : bf16 to vector<2x384xbf16>
    %143 = arith.select %141, %138, %142 : vector<2x384xi1>, vector<2x384xbf16>
    %144 = arith.maximumf %135, %143 : vector<2x384xbf16>
    %145 = vector.extract_strided_slice %126 {offsets = [0, 352], sizes = [2, 32], strides = [1, 1]} : vector<2x384xbf16> to vector<2x32xbf16>
    %146 = vector.extract_strided_slice %126 {offsets = [0, 0], sizes = [2, 352], strides = [1, 1]} : vector<2x384xbf16> to vector<2x352xbf16>
    %147 = tpu.concatenate %145, %146 in 1 : vector<2x32xbf16>, vector<2x352xbf16> -> vector<2x384xbf16>
    %cst_32 = arith.constant -3.000000e+38 : f32
    %148 = arith.truncf %cst_32 : f32 to bf16
    %149 = vector.shape_cast %55 : vector<1x384xi1> to vector<1x384xi1>
    %150 = vector.broadcast %149 : vector<1x384xi1> to vector<2x384xi1>
    %151 = vector.broadcast %148 : bf16 to vector<2x384xbf16>
    %152 = arith.select %150, %147, %151 : vector<2x384xi1>, vector<2x384xbf16>
    %153 = arith.maximumf %144, %152 : vector<2x384xbf16>
    %154 = vector.extract_strided_slice %126 {offsets = [0, 32], sizes = [2, 352], strides = [1, 1]} : vector<2x384xbf16> to vector<2x352xbf16>
    %155 = vector.extract_strided_slice %126 {offsets = [0, 0], sizes = [2, 32], strides = [1, 1]} : vector<2x384xbf16> to vector<2x32xbf16>
    %156 = tpu.concatenate %154, %155 in 1 : vector<2x352xbf16>, vector<2x32xbf16> -> vector<2x384xbf16>
    %cst_33 = arith.constant -3.000000e+38 : f32
    %157 = arith.truncf %cst_33 : f32 to bf16
    %158 = vector.shape_cast %64 : vector<1x384xi1> to vector<1x384xi1>
    %159 = vector.broadcast %158 : vector<1x384xi1> to vector<2x384xi1>
    %160 = vector.broadcast %157 : bf16 to vector<2x384xbf16>
    %161 = arith.select %159, %156, %160 : vector<2x384xi1>, vector<2x384xbf16>
    %162 = arith.maximumf %153, %161 : vector<2x384xbf16>
    %c1 = arith.constant 1 : index
    %c0_34 = arith.constant 0 : index
    %c0_35 = arith.constant 0 : index
    %163 = vector.load %arg9[%c1, %c0_34, %c0_35] : memref<4x8x2xbf16, #tpu.memory_space<vmem>>, vector<1x8x2xbf16>
    %164 = vector.shape_cast %163 : vector<1x8x2xbf16> to vector<8x2xbf16>
    %165 = vector.extract_strided_slice %162 {offsets = [0, 128], sizes = [2, 128], strides = [1, 1]} : vector<2x384xbf16> to vector<2x128xbf16>
    %cst_36 = arith.constant dense<0.000000e+00> : vector<8x128xf32>
    %166 = tpu.matmul %164, %165, %cst_36 {dimension_numbers = #tpu.dot_dimension_numbers<[1], [0], [0], [1], [0, 0, 1, 1], [], []>} : vector<8x2xbf16>, vector<2x128xbf16>, vector<8x128xf32> -> vector<8x128xf32>
    %167 = arith.addf %90, %166 : vector<8x128xf32>
    %168 = vector.extract_strided_slice %162 {offsets = [0, 383], sizes = [2, 1], strides = [1, 1]} : vector<2x384xbf16> to vector<2x1xbf16>
    %169 = vector.extract_strided_slice %162 {offsets = [0, 0], sizes = [2, 383], strides = [1, 1]} : vector<2x384xbf16> to vector<2x383xbf16>
    %170 = tpu.concatenate %168, %169 in 1 : vector<2x1xbf16>, vector<2x383xbf16> -> vector<2x384xbf16>
    %cst_37 = arith.constant -3.000000e+38 : f32
    %171 = arith.truncf %cst_37 : f32 to bf16
    %172 = vector.shape_cast %16 : vector<1x384xi1> to vector<1x384xi1>
    %173 = vector.broadcast %172 : vector<1x384xi1> to vector<2x384xi1>
    %174 = vector.broadcast %171 : bf16 to vector<2x384xbf16>
    %175 = arith.select %173, %170, %174 : vector<2x384xi1>, vector<2x384xbf16>
    %176 = arith.maximumf %162, %175 : vector<2x384xbf16>
    %177 = vector.extract_strided_slice %162 {offsets = [0, 1], sizes = [2, 383], strides = [1, 1]} : vector<2x384xbf16> to vector<2x383xbf16>
    %178 = vector.extract_strided_slice %162 {offsets = [0, 0], sizes = [2, 1], strides = [1, 1]} : vector<2x384xbf16> to vector<2x1xbf16>
    %179 = tpu.concatenate %177, %178 in 1 : vector<2x383xbf16>, vector<2x1xbf16> -> vector<2x384xbf16>
    %cst_38 = arith.constant -3.000000e+38 : f32
    %180 = arith.truncf %cst_38 : f32 to bf16
    %181 = vector.shape_cast %20 : vector<1x384xi1> to vector<1x384xi1>
    %182 = vector.broadcast %181 : vector<1x384xi1> to vector<2x384xi1>
    %183 = vector.broadcast %180 : bf16 to vector<2x384xbf16>
    %184 = arith.select %182, %179, %183 : vector<2x384xi1>, vector<2x384xbf16>
    %185 = arith.maximumf %176, %184 : vector<2x384xbf16>
    %186 = vector.extract_strided_slice %162 {offsets = [0, 382], sizes = [2, 2], strides = [1, 1]} : vector<2x384xbf16> to vector<2x2xbf16>
    %187 = vector.extract_strided_slice %162 {offsets = [0, 0], sizes = [2, 382], strides = [1, 1]} : vector<2x384xbf16> to vector<2x382xbf16>
    %188 = tpu.concatenate %186, %187 in 1 : vector<2x2xbf16>, vector<2x382xbf16> -> vector<2x384xbf16>
    %cst_39 = arith.constant -3.000000e+38 : f32
    %189 = arith.truncf %cst_39 : f32 to bf16
    %190 = vector.shape_cast %42 : vector<1x384xi1> to vector<1x384xi1>
    %191 = vector.broadcast %190 : vector<1x384xi1> to vector<2x384xi1>
    %192 = vector.broadcast %189 : bf16 to vector<2x384xbf16>
    %193 = arith.select %191, %188, %192 : vector<2x384xi1>, vector<2x384xbf16>
    %194 = arith.maximumf %185, %193 : vector<2x384xbf16>
    %195 = vector.extract_strided_slice %162 {offsets = [0, 2], sizes = [2, 382], strides = [1, 1]} : vector<2x384xbf16> to vector<2x382xbf16>
    %196 = vector.extract_strided_slice %162 {offsets = [0, 0], sizes = [2, 2], strides = [1, 1]} : vector<2x384xbf16> to vector<2x2xbf16>
    %197 = tpu.concatenate %195, %196 in 1 : vector<2x382xbf16>, vector<2x2xbf16> -> vector<2x384xbf16>
    %cst_40 = arith.constant -3.000000e+38 : f32
    %198 = arith.truncf %cst_40 : f32 to bf16
    %199 = vector.shape_cast %46 : vector<1x384xi1> to vector<1x384xi1>
    %200 = vector.broadcast %199 : vector<1x384xi1> to vector<2x384xi1>
    %201 = vector.broadcast %198 : bf16 to vector<2x384xbf16>
    %202 = arith.select %200, %197, %201 : vector<2x384xi1>, vector<2x384xbf16>
    %203 = arith.maximumf %194, %202 : vector<2x384xbf16>
    %204 = vector.extract_strided_slice %203 {offsets = [0, 368], sizes = [2, 16], strides = [1, 1]} : vector<2x384xbf16> to vector<2x16xbf16>
    %205 = vector.extract_strided_slice %203 {offsets = [0, 0], sizes = [2, 368], strides = [1, 1]} : vector<2x384xbf16> to vector<2x368xbf16>
    %206 = tpu.concatenate %204, %205 in 1 : vector<2x16xbf16>, vector<2x368xbf16> -> vector<2x384xbf16>
    %cst_41 = arith.constant -3.000000e+38 : f32
    %207 = arith.truncf %cst_41 : f32 to bf16
    %208 = vector.shape_cast %29 : vector<1x384xi1> to vector<1x384xi1>
    %209 = vector.broadcast %208 : vector<1x384xi1> to vector<2x384xi1>
    %210 = vector.broadcast %207 : bf16 to vector<2x384xbf16>
    %211 = arith.select %209, %206, %210 : vector<2x384xi1>, vector<2x384xbf16>
    %212 = arith.maximumf %203, %211 : vector<2x384xbf16>
    %213 = vector.extract_strided_slice %203 {offsets = [0, 16], sizes = [2, 368], strides = [1, 1]} : vector<2x384xbf16> to vector<2x368xbf16>
    %214 = vector.extract_strided_slice %203 {offsets = [0, 0], sizes = [2, 16], strides = [1, 1]} : vector<2x384xbf16> to vector<2x16xbf16>
    %215 = tpu.concatenate %213, %214 in 1 : vector<2x368xbf16>, vector<2x16xbf16> -> vector<2x384xbf16>
    %cst_42 = arith.constant -3.000000e+38 : f32
    %216 = arith.truncf %cst_42 : f32 to bf16
    %217 = vector.shape_cast %38 : vector<1x384xi1> to vector<1x384xi1>
    %218 = vector.broadcast %217 : vector<1x384xi1> to vector<2x384xi1>
    %219 = vector.broadcast %216 : bf16 to vector<2x384xbf16>
    %220 = arith.select %218, %215, %219 : vector<2x384xi1>, vector<2x384xbf16>
    %221 = arith.maximumf %212, %220 : vector<2x384xbf16>
    %222 = vector.extract_strided_slice %203 {offsets = [0, 352], sizes = [2, 32], strides = [1, 1]} : vector<2x384xbf16> to vector<2x32xbf16>
    %223 = vector.extract_strided_slice %203 {offsets = [0, 0], sizes = [2, 352], strides = [1, 1]} : vector<2x384xbf16> to vector<2x352xbf16>
    %224 = tpu.concatenate %222, %223 in 1 : vector<2x32xbf16>, vector<2x352xbf16> -> vector<2x384xbf16>
    %cst_43 = arith.constant -3.000000e+38 : f32
    %225 = arith.truncf %cst_43 : f32 to bf16
    %226 = vector.shape_cast %55 : vector<1x384xi1> to vector<1x384xi1>
    %227 = vector.broadcast %226 : vector<1x384xi1> to vector<2x384xi1>
    %228 = vector.broadcast %225 : bf16 to vector<2x384xbf16>
    %229 = arith.select %227, %224, %228 : vector<2x384xi1>, vector<2x384xbf16>
    %230 = arith.maximumf %221, %229 : vector<2x384xbf16>
    %231 = vector.extract_strided_slice %203 {offsets = [0, 32], sizes = [2, 352], strides = [1, 1]} : vector<2x384xbf16> to vector<2x352xbf16>
    %232 = vector.extract_strided_slice %203 {offsets = [0, 0], sizes = [2, 32], strides = [1, 1]} : vector<2x384xbf16> to vector<2x32xbf16>
    %233 = tpu.concatenate %231, %232 in 1 : vector<2x352xbf16>, vector<2x32xbf16> -> vector<2x384xbf16>
    %cst_44 = arith.constant -3.000000e+38 : f32
    %234 = arith.truncf %cst_44 : f32 to bf16
    %235 = vector.shape_cast %64 : vector<1x384xi1> to vector<1x384xi1>
    %236 = vector.broadcast %235 : vector<1x384xi1> to vector<2x384xi1>
    %237 = vector.broadcast %234 : bf16 to vector<2x384xbf16>
    %238 = arith.select %236, %233, %237 : vector<2x384xi1>, vector<2x384xbf16>
    %239 = arith.maximumf %230, %238 : vector<2x384xbf16>
    %c2 = arith.constant 2 : index
    %c0_45 = arith.constant 0 : index
    %c0_46 = arith.constant 0 : index
    %240 = vector.load %arg9[%c2, %c0_45, %c0_46] : memref<4x8x2xbf16, #tpu.memory_space<vmem>>, vector<1x8x2xbf16>
    %241 = vector.shape_cast %240 : vector<1x8x2xbf16> to vector<8x2xbf16>
    %242 = vector.extract_strided_slice %239 {offsets = [0, 128], sizes = [2, 128], strides = [1, 1]} : vector<2x384xbf16> to vector<2x128xbf16>
    %cst_47 = arith.constant dense<0.000000e+00> : vector<8x128xf32>
    %243 = tpu.matmul %241, %242, %cst_47 {dimension_numbers = #tpu.dot_dimension_numbers<[1], [0], [0], [1], [0, 0, 1, 1], [], []>} : vector<8x2xbf16>, vector<2x128xbf16>, vector<8x128xf32> -> vector<8x128xf32>
    %244 = arith.addf %167, %243 : vector<8x128xf32>
    %245 = vector.extract_strided_slice %239 {offsets = [0, 383], sizes = [2, 1], strides = [1, 1]} : vector<2x384xbf16> to vector<2x1xbf16>
    %246 = vector.extract_strided_slice %239 {offsets = [0, 0], sizes = [2, 383], strides = [1, 1]} : vector<2x384xbf16> to vector<2x383xbf16>
    %247 = tpu.concatenate %245, %246 in 1 : vector<2x1xbf16>, vector<2x383xbf16> -> vector<2x384xbf16>
    %cst_48 = arith.constant -3.000000e+38 : f32
    %248 = arith.truncf %cst_48 : f32 to bf16
    %249 = vector.shape_cast %16 : vector<1x384xi1> to vector<1x384xi1>
    %250 = vector.broadcast %249 : vector<1x384xi1> to vector<2x384xi1>
    %251 = vector.broadcast %248 : bf16 to vector<2x384xbf16>
    %252 = arith.select %250, %247, %251 : vector<2x384xi1>, vector<2x384xbf16>
    %253 = arith.maximumf %239, %252 : vector<2x384xbf16>
    %254 = vector.extract_strided_slice %239 {offsets = [0, 1], sizes = [2, 383], strides = [1, 1]} : vector<2x384xbf16> to vector<2x383xbf16>
    %255 = vector.extract_strided_slice %239 {offsets = [0, 0], sizes = [2, 1], strides = [1, 1]} : vector<2x384xbf16> to vector<2x1xbf16>
    %256 = tpu.concatenate %254, %255 in 1 : vector<2x383xbf16>, vector<2x1xbf16> -> vector<2x384xbf16>
    %cst_49 = arith.constant -3.000000e+38 : f32
    %257 = arith.truncf %cst_49 : f32 to bf16
    %258 = vector.shape_cast %20 : vector<1x384xi1> to vector<1x384xi1>
    %259 = vector.broadcast %258 : vector<1x384xi1> to vector<2x384xi1>
    %260 = vector.broadcast %257 : bf16 to vector<2x384xbf16>
    %261 = arith.select %259, %256, %260 : vector<2x384xi1>, vector<2x384xbf16>
    %262 = arith.maximumf %253, %261 : vector<2x384xbf16>
    %263 = vector.extract_strided_slice %239 {offsets = [0, 382], sizes = [2, 2], strides = [1, 1]} : vector<2x384xbf16> to vector<2x2xbf16>
    %264 = vector.extract_strided_slice %239 {offsets = [0, 0], sizes = [2, 382], strides = [1, 1]} : vector<2x384xbf16> to vector<2x382xbf16>
    %265 = tpu.concatenate %263, %264 in 1 : vector<2x2xbf16>, vector<2x382xbf16> -> vector<2x384xbf16>
    %cst_50 = arith.constant -3.000000e+38 : f32
    %266 = arith.truncf %cst_50 : f32 to bf16
    %267 = vector.shape_cast %42 : vector<1x384xi1> to vector<1x384xi1>
    %268 = vector.broadcast %267 : vector<1x384xi1> to vector<2x384xi1>
    %269 = vector.broadcast %266 : bf16 to vector<2x384xbf16>
    %270 = arith.select %268, %265, %269 : vector<2x384xi1>, vector<2x384xbf16>
    %271 = arith.maximumf %262, %270 : vector<2x384xbf16>
    %272 = vector.extract_strided_slice %239 {offsets = [0, 2], sizes = [2, 382], strides = [1, 1]} : vector<2x384xbf16> to vector<2x382xbf16>
    %273 = vector.extract_strided_slice %239 {offsets = [0, 0], sizes = [2, 2], strides = [1, 1]} : vector<2x384xbf16> to vector<2x2xbf16>
    %274 = tpu.concatenate %272, %273 in 1 : vector<2x382xbf16>, vector<2x2xbf16> -> vector<2x384xbf16>
    %cst_51 = arith.constant -3.000000e+38 : f32
    %275 = arith.truncf %cst_51 : f32 to bf16
    %276 = vector.shape_cast %46 : vector<1x384xi1> to vector<1x384xi1>
    %277 = vector.broadcast %276 : vector<1x384xi1> to vector<2x384xi1>
    %278 = vector.broadcast %275 : bf16 to vector<2x384xbf16>
    %279 = arith.select %277, %274, %278 : vector<2x384xi1>, vector<2x384xbf16>
    %280 = arith.maximumf %271, %279 : vector<2x384xbf16>
    %281 = vector.extract_strided_slice %280 {offsets = [0, 368], sizes = [2, 16], strides = [1, 1]} : vector<2x384xbf16> to vector<2x16xbf16>
    %282 = vector.extract_strided_slice %280 {offsets = [0, 0], sizes = [2, 368], strides = [1, 1]} : vector<2x384xbf16> to vector<2x368xbf16>
    %283 = tpu.concatenate %281, %282 in 1 : vector<2x16xbf16>, vector<2x368xbf16> -> vector<2x384xbf16>
    %cst_52 = arith.constant -3.000000e+38 : f32
    %284 = arith.truncf %cst_52 : f32 to bf16
    %285 = vector.shape_cast %29 : vector<1x384xi1> to vector<1x384xi1>
    %286 = vector.broadcast %285 : vector<1x384xi1> to vector<2x384xi1>
    %287 = vector.broadcast %284 : bf16 to vector<2x384xbf16>
    %288 = arith.select %286, %283, %287 : vector<2x384xi1>, vector<2x384xbf16>
    %289 = arith.maximumf %280, %288 : vector<2x384xbf16>
    %290 = vector.extract_strided_slice %280 {offsets = [0, 16], sizes = [2, 368], strides = [1, 1]} : vector<2x384xbf16> to vector<2x368xbf16>
    %291 = vector.extract_strided_slice %280 {offsets = [0, 0], sizes = [2, 16], strides = [1, 1]} : vector<2x384xbf16> to vector<2x16xbf16>
    %292 = tpu.concatenate %290, %291 in 1 : vector<2x368xbf16>, vector<2x16xbf16> -> vector<2x384xbf16>
    %cst_53 = arith.constant -3.000000e+38 : f32
    %293 = arith.truncf %cst_53 : f32 to bf16
    %294 = vector.shape_cast %38 : vector<1x384xi1> to vector<1x384xi1>
    %295 = vector.broadcast %294 : vector<1x384xi1> to vector<2x384xi1>
    %296 = vector.broadcast %293 : bf16 to vector<2x384xbf16>
    %297 = arith.select %295, %292, %296 : vector<2x384xi1>, vector<2x384xbf16>
    %298 = arith.maximumf %289, %297 : vector<2x384xbf16>
    %299 = vector.extract_strided_slice %280 {offsets = [0, 352], sizes = [2, 32], strides = [1, 1]} : vector<2x384xbf16> to vector<2x32xbf16>
    %300 = vector.extract_strided_slice %280 {offsets = [0, 0], sizes = [2, 352], strides = [1, 1]} : vector<2x384xbf16> to vector<2x352xbf16>
    %301 = tpu.concatenate %299, %300 in 1 : vector<2x32xbf16>, vector<2x352xbf16> -> vector<2x384xbf16>
    %cst_54 = arith.constant -3.000000e+38 : f32
    %302 = arith.truncf %cst_54 : f32 to bf16
    %303 = vector.shape_cast %55 : vector<1x384xi1> to vector<1x384xi1>
    %304 = vector.broadcast %303 : vector<1x384xi1> to vector<2x384xi1>
    %305 = vector.broadcast %302 : bf16 to vector<2x384xbf16>
    %306 = arith.select %304, %301, %305 : vector<2x384xi1>, vector<2x384xbf16>
    %307 = arith.maximumf %298, %306 : vector<2x384xbf16>
    %308 = vector.extract_strided_slice %280 {offsets = [0, 32], sizes = [2, 352], strides = [1, 1]} : vector<2x384xbf16> to vector<2x352xbf16>
    %309 = vector.extract_strided_slice %280 {offsets = [0, 0], sizes = [2, 32], strides = [1, 1]} : vector<2x384xbf16> to vector<2x32xbf16>
    %310 = tpu.concatenate %308, %309 in 1 : vector<2x352xbf16>, vector<2x32xbf16> -> vector<2x384xbf16>
    %cst_55 = arith.constant -3.000000e+38 : f32
    %311 = arith.truncf %cst_55 : f32 to bf16
    %312 = vector.shape_cast %64 : vector<1x384xi1> to vector<1x384xi1>
    %313 = vector.broadcast %312 : vector<1x384xi1> to vector<2x384xi1>
    %314 = vector.broadcast %311 : bf16 to vector<2x384xbf16>
    %315 = arith.select %313, %310, %314 : vector<2x384xi1>, vector<2x384xbf16>
    %316 = arith.maximumf %307, %315 : vector<2x384xbf16>
    %c3 = arith.constant 3 : index
    %c0_56 = arith.constant 0 : index
    %c0_57 = arith.constant 0 : index
    %317 = vector.load %arg9[%c3, %c0_56, %c0_57] : memref<4x8x2xbf16, #tpu.memory_space<vmem>>, vector<1x8x2xbf16>
    %318 = vector.shape_cast %317 : vector<1x8x2xbf16> to vector<8x2xbf16>
    %319 = vector.extract_strided_slice %316 {offsets = [0, 128], sizes = [2, 128], strides = [1, 1]} : vector<2x384xbf16> to vector<2x128xbf16>
    %cst_58 = arith.constant dense<0.000000e+00> : vector<8x128xf32>
    %320 = tpu.matmul %318, %319, %cst_58 {dimension_numbers = #tpu.dot_dimension_numbers<[1], [0], [0], [1], [0, 0, 1, 1], [], []>} : vector<8x2xbf16>, vector<2x128xbf16>, vector<8x128xf32> -> vector<8x128xf32>
    %321 = arith.addf %244, %320 : vector<8x128xf32>
    %c0_59 = arith.constant 0 : index
    %c0_60 = arith.constant 0 : index
    %322 = vector.load %arg10[%c0_59, %c0_60] : memref<8x1xf32, #tpu.memory_space<vmem>>, vector<8x1xf32>
    %323 = vector.broadcast %322 : vector<8x1xf32> to vector<8x128xf32>
    %324 = arith.mulf %321, %323 : vector<8x128xf32>
    %c0_61 = arith.constant 0 : index
    %c0_62 = arith.constant 0 : index
    %325 = vector.load %arg11[%c0_61, %c0_62] : memref<8x1xf32, #tpu.memory_space<vmem>>, vector<8x1xf32>
    %326 = vector.broadcast %325 : vector<8x1xf32> to vector<8x128xf32>
    %327 = arith.addf %324, %326 : vector<8x128xf32>
    %328 = arith.negf %327 : vector<8x128xf32>
    %329 = math.exp %328 : vector<8x128xf32>
    %cst_63 = arith.constant 1.000000e+00 : f32
    %330 = vector.broadcast %cst_63 : f32 to vector<8x128xf32>
    %331 = arith.addf %330, %329 : vector<8x128xf32>
    %332 = arith.divf %330, %331 : vector<8x128xf32>
    %333 = arith.mulf %327, %332 : vector<8x128xf32>
    %c0_64 = arith.constant 0 : index
    %c0_65 = arith.constant 0 : index
    %c0_66 = arith.constant 0 : index
    %334 = vector.load %arg12[%c0_64, %c0_65, %c0_66] : memref<1x8x128xf32, #tpu.memory_space<vmem>>, vector<1x8x128xf32>
    %335 = vector.shape_cast %334 : vector<1x8x128xf32> to vector<8x128xf32>
    %336 = vector.shape_cast %333 : vector<8x128xf32> to vector<1x8x128xf32>
    tpu.vector_store %arg12[%c0_64, %c0_65, %c0_66], %336 {strides = array<i32>} : memref<1x8x128xf32, #tpu.memory_space<vmem>>, vector<1x8x128xf32>,
    return
  }
  func.func @transform_0(%arg0: i32, %arg1: i32) -> (i32, i32) {
    %c0_i32 = arith.constant 0 : i32
    %c0_i32_0 = arith.constant 0 : i32
    %c0_i32_1 = arith.constant 0 : i32
    return %c0_i32, %c0_i32_0 : i32, i32
  }
  func.func @transform_1(%arg0: i32, %arg1: i32) -> (i32, i32, i32) {
    %c1_i32 = arith.constant 1 : i32
    %0 = arith.subi %arg1, %c1_i32 : i32
    %c0_i32 = arith.constant 0 : i32
    %1 = arith.maxsi %0, %c0_i32 : i32
    %c0_i32_0 = arith.constant 0 : i32
    %c0_i32_1 = arith.constant 0 : i32
    return %arg0, %c0_i32_0, %1 : i32, i32, i32
  }
  func.func @transform_2(%arg0: i32, %arg1: i32) -> (i32, i32, i32) {
    %c0_i32 = arith.constant 0 : i32
    %c0_i32_0 = arith.constant 0 : i32
    return %arg0, %c0_i32, %arg1 : i32, i32, i32
  }
  func.func @transform_3(%arg0: i32, %arg1: i32) -> (i32, i32, i32) {
    %c1_i32 = arith.constant 1 : i32
    %0 = arith.addi %arg1, %c1_i32 : i32
    %c1_i32_0 = arith.constant 1 : i32
    %1 = arith.minsi %0, %c1_i32_0 : i32
    %c0_i32 = arith.constant 0 : i32
    %c0_i32_1 = arith.constant 0 : i32
    return %arg0, %c0_i32, %1 : i32, i32, i32
  }
  func.func @transform_4(%arg0: i32, %arg1: i32) -> (i32, i32) {
    %c0_i32 = arith.constant 0 : i32
    %c0_i32_0 = arith.constant 0 : i32
    %c0_i32_1 = arith.constant 0 : i32
    return %c0_i32, %c0_i32_0 : i32, i32
  }
  func.func @transform_5(%arg0: i32, %arg1: i32) -> (i32, i32) {
    %c0_i32 = arith.constant 0 : i32
    %c0_i32_0 = arith.constant 0 : i32
    %c0_i32_1 = arith.constant 0 : i32
    return %c0_i32, %c0_i32_0 : i32, i32
  }
  func.func @transform_6(%arg0: i32, %arg1: i32) -> (i32, i32) {
    %c0_i32 = arith.constant 0 : i32
    %c0_i32_0 = arith.constant 0 : i32
    %c0_i32_1 = arith.constant 0 : i32
    return %c0_i32, %c0_i32_0 : i32, i32
  }
  func.func @transform_7(%arg0: i32, %arg1: i32) -> (i32, i32, i32) {
    %c0_i32 = arith.constant 0 : i32
    %c0_i32_0 = arith.constant 0 : i32
    %c0_i32_1 = arith.constant 0 : i32
    %c0_i32_2 = arith.constant 0 : i32
    return %c0_i32, %c0_i32_0, %c0_i32_1 : i32, i32, i32
  }
  func.func @transform_8(%arg0: i32, %arg1: i32) -> (i32, i32) {
    %c0_i32 = arith.constant 0 : i32
    %c0_i32_0 = arith.constant 0 : i32
    %c0_i32_1 = arith.constant 0 : i32
    return %c0_i32, %c0_i32_0 : i32, i32
  }
  func.func @transform_9(%arg0: i32, %arg1: i32) -> (i32, i32) {
    %c0_i32 = arith.constant 0 : i32
    %c0_i32_0 = arith.constant 0 : i32
    %c0_i32_1 = arith.constant 0 : i32
    return %c0_i32, %c0_i32_0 : i32, i32
  }
  func.func @transform_10(%arg0: i32, %arg1: i32) -> (i32, i32, i32) {
    %c0_i32 = arith.constant 0 : i32
    %c0_i32_0 = arith.constant 0 : i32
    return %arg0, %c0_i32, %arg1 : i32, i32, i32
  }
}

</mosaic_0001>

<llo_original>
// kernel: tpu_custom_call.1
$region0: #{tpu_custom_call.1}
  #allocation0 [shape = 'u32[]', space=smem, size = 0x4, offset = 0x4, fixed_abs, tag = 'smem constant byte address 0x4 - core index']
  #allocation1 [shape = 'u32[72,128]{1,0:T(1,128)}', space=vmem, size = 0x9000, scoped, tag = 'internal scratch']
  %s0 = inlined_call_operand.vmem [shape: s32[1,384], index: 0, kind: input, shape index: {}]
  %s1 = inlined_call_operand.vmem [shape: bf16[2,4,256], index: 1, kind: input, shape index: {}]
  %s2 = inlined_call_operand.vmem [shape: bf16[2,4,256], index: 2, kind: input, shape index: {}]
  %s3 = inlined_call_operand.vmem [shape: bf16[2,4,256], index: 3, kind: input, shape index: {}]
  %s4 = inlined_call_operand.vmem [shape: bf16[2,4], index: 4, kind: input, shape index: {}]
  %s5 = inlined_call_operand.vmem [shape: f32[2,1], index: 5, kind: input, shape index: {}]
  %s6 = inlined_call_operand.vmem [shape: f32[2,1], index: 6, kind: input, shape index: {}]
  %s7 = inlined_call_operand.vmem [shape: bf16[4,8,2], index: 7, kind: input, shape index: {}]
  %s8 = inlined_call_operand.vmem [shape: f32[8,1], index: 8, kind: input, shape index: {}]
  %s9 = inlined_call_operand.vmem [shape: f32[8,1], index: 9, kind: input, shape index: {}]
  %s10 = inlined_call_operand.hbm [shape: f32[2,8,256], index: 10, kind: output, shape index: {}]
  %s11 = sld [smem:[#allocation0]]
  $region73: #{tpu_custom_call.1} parent=0
    _
  %s13 = ssub.s32 1, %s11
  %s14 = scalar_select 0, %s13, %s11
  $region1: #{tpu_custom_call.1} parent=0
    #allocation2 [shape = 'u8[8192]{0}', space=vmem, size = 0x2000, scoped, tag = 'output window, operand 0']
    #allocation3 [shape = 's32[2]{0}', space=sflag, size = 0x8, scoped, tag = 'scoped memory for tpu_custom_call.1']
    %15 = vsyncpa [#allocation3], 0
    %s16 = scalar_lea.sflag [#allocation3], 1
    %17 = vsyncpa %s16, 0
    loop: start=0, step=1, limit=6
    $region2: #{tpu_custom_call.1} parent=1 // loop_pre_header
      _
    $region3: #{tpu_custom_call.1} parent=1 // loop_header
      %s19 = sphi 0, %s23
      %p20 = scmp.ge.s32.totalorder %s19, 6
      %s26 = sphi 0, %s38
      %s27 = sphi 0, %s34
      %s28 = sphi 0, %s26
      %s29 = sphi 0, %s27
      %s30 = sphi 0, %s28
      %s31 = sphi 0, %s29
      %s39 = sphi 0, %s39
      %s41 = sphi 0, %s39
      %s42 = sphi 0, %s41
      %s56 = sphi 0, %s42
      %s70 = sphi 0, %s72
      %s73 = sphi 0, %s70
      %s74 = sphi 0, %s73
      %s90 = sphi 0, %s74
      %s98 = sphi 0, %s100
      %s101 = sphi 0, %s98
      %s102 = sphi 0, %s101
      %s118 = sphi 0, %s102
      %s132 = sphi 0, %s134
      %s135 = sphi 0, %s132
      %s136 = sphi 0, %s135
      %s152 = sphi 0, %s136
      %s156 = sphi 0, %s156
      %s158 = sphi 0, %s156
      %s159 = sphi 0, %s158
      %s173 = sphi 0, %s159
      %s177 = sphi 0, %s177
      %s179 = sphi 0, %s177
      %s180 = sphi 0, %s179
      %s194 = sphi 0, %s180
      %s198 = sphi 0, %s198
      %s200 = sphi 0, %s198
      %s201 = sphi 0, %s200
      %s215 = sphi 0, %s201
      %s219 = sphi 0, %s219
      %s221 = sphi 0, %s219
      %s222 = sphi 0, %s221
      %s236 = sphi 0, %s222
      %s240 = sphi 0, %s240
      %s242 = sphi 0, %s240
      %s243 = sphi 0, %s242
      %s257 = sphi 0, %s243
      %s261 = sphi 0, %s261
      %s263 = sphi 0, %s261
      %s264 = sphi 0, %s263
      %s278 = sphi 0, %s264
      %s286 = sphi 0, %s288
      %s289 = sphi 0, %s286
      %s290 = sphi 0, %s289
      %s306 = sphi 0, %s290
    $region4: #{tpu_custom_call.1} parent=1 // loop_header_branch
      %22 = sbr.rel (%p20) target = $region8
    $region5: #{tpu_custom_call.1} parent=1 // loop_body
      %s24 = ssub.s32 %s19, 1
      %s25 = ssub.s32 %s19, 2
      %s32 = sadd.s32 1, %s27
      %p33 = scmp.ge.s32.totalorder %s32, 2
      %s34 = scalar_select %p33, 0, %s32
      %s35 = sadd.s32 1, %s26
      %s36 = scalar_select %p33, %s35, %s26
      %p37 = scmp.ge.s32.totalorder %s36, 2
      %s38 = scalar_select %p37, 0, %s36
      %s40 = sadd.s32 %s39, 1
      %p43 = scmp.eq.s32.totalorder %s19, 3
      %p44 = scmp.ne.s32.totalorder %s39, %s41
      %p45 = scmp.eq.s32.totalorder %s19, 0
      %p46 = por %p44, %p45
      %p47 = scmp.ne.s32.totalorder %s39, %s41
      %p48 = scmp.eq.s32.totalorder %s24, 3
      %p49 = por %p47, %p48
      %p50 = scmp.ne.s32.totalorder %s41, %s42
      %p51 = scmp.eq.s32.totalorder %s24, 0
      %p52 = por %p50, %p51
      %p53 = scmp.ne.s32.totalorder %s41, %s42
      %p54 = scmp.eq.s32.totalorder %s25, 3
      %p55 = por %p53, %p54
      %p57 = scmp.ne.s32.totalorder %s42, %s56
      %p58 = scmp.eq.s32.totalorder %s25, 0
      %p59 = por %p57, %p58
      %s60 = ssub.s32 %s27, 1
      %p61 = scmp.gt.s32.totalorder %s60, 0
      %s62 = scalar_select %p61, %s60, 0
      %s63 = ssub.s32 %s34, 1
      %p64 = scmp.gt.s32.totalorder %s63, 0
      %s65 = scalar_select %p64, %s63, 0
      %s66 = ssub.s32 %s26, %s38
      %s67 = ssub.s32 %s62, %s65
      %s68 = sor.u32 %s66, %s67
      %p69 = scmp.eq.s32.totalorder %s68, 0
      %s71 = sadd.s32 %s70, 1
      %s72 = scalar_select %p69, %s70, %s71
      %p75 = pneg %p69
      %p76 = scmp.eq.s32.totalorder %s19, 3
      %p77 = por %p75, %p76
      %p78 = scmp.ne.s32.totalorder %s70, %s73
      %p79 = scmp.eq.s32.totalorder %s19, 0
      %p80 = por %p78, %p79
      %p81 = scmp.ne.s32.totalorder %s70, %s73
      %p82 = scmp.eq.s32.totalorder %s24, 3
      %p83 = por %p81, %p82
      %p84 = scmp.ne.s32.totalorder %s73, %s74
      %p85 = scmp.eq.s32.totalorder %s24, 0
      %p86 = por %p84, %p85
      %p87 = scmp.ne.s32.totalorder %s73, %s74
      %p88 = scmp.eq.s32.totalorder %s25, 3
      %p89 = por %p87, %p88
      %p91 = scmp.ne.s32.totalorder %s74, %s90
      %p92 = scmp.eq.s32.totalorder %s25, 0
      %p93 = por %p91, %p92
      %s94 = ssub.s32 %s26, %s38
      %s95 = ssub.s32 %s27, %s34
      %s96 = sor.u32 %s94, %s95
      %p97 = scmp.eq.s32.totalorder %s96, 0
      %s99 = sadd.s32 %s98, 1
      %s100 = scalar_select %p97, %s98, %s99
      %p103 = pneg %p97
      %p104 = scmp.eq.s32.totalorder %s19, 3
      %p105 = por %p103, %p104
      %p106 = scmp.ne.s32.totalorder %s98, %s101
      %p107 = scmp.eq.s32.totalorder %s19, 0
      %p108 = por %p106, %p107
      %p109 = scmp.ne.s32.totalorder %s98, %s101
      %p110 = scmp.eq.s32.totalorder %s24, 3
      %p111 = por %p109, %p110
      %p112 = scmp.ne.s32.totalorder %s101, %s102
      %p113 = scmp.eq.s32.totalorder %s24, 0
      %p114 = por %p112, %p113
      %p115 = scmp.ne.s32.totalorder %s101, %s102
      %p116 = scmp.eq.s32.totalorder %s25, 3
      %p117 = por %p115, %p116
      %p119 = scmp.ne.s32.totalorder %s102, %s118
      %p120 = scmp.eq.s32.totalorder %s25, 0
      %p121 = por %p119, %p120
      %s122 = sadd.s32 %s27, 1
      %p123 = scmp.lt.s32.totalorder %s122, 1
      %s124 = scalar_select %p123, %s122, 1
      %s125 = sadd.s32 %s34, 1
      %p126 = scmp.lt.s32.totalorder %s125, 1
      %s127 = scalar_select %p126, %s125, 1
      %s128 = ssub.s32 %s26, %s38
      %s129 = ssub.s32 %s124, %s127
      %s130 = sor.u32 %s128, %s129
      %p131 = scmp.eq.s32.totalorder %s130, 0
      %s133 = sadd.s32 %s132, 1
      %s134 = scalar_select %p131, %s132, %s133
      %p137 = pneg %p131
      %p138 = scmp.eq.s32.totalorder %s19, 3
      %p139 = por %p137, %p138
      %p140 = scmp.ne.s32.totalorder %s132, %s135
      %p141 = scmp.eq.s32.totalorder %s19, 0
      %p142 = por %p140, %p141
      %p143 = scmp.ne.s32.totalorder %s132, %s135
      %p144 = scmp.eq.s32.totalorder %s24, 3
      %p145 = por %p143, %p144
      %p146 = scmp.ne.s32.totalorder %s135, %s136
      %p147 = scmp.eq.s32.totalorder %s24, 0
      %p148 = por %p146, %p147
      %p149 = scmp.ne.s32.totalorder %s135, %s136
      %p150 = scmp.eq.s32.totalorder %s25, 3
      %p151 = por %p149, %p150
      %p153 = scmp.ne.s32.totalorder %s136, %s152
      %p154 = scmp.eq.s32.totalorder %s25, 0
      %p155 = por %p153, %p154
      %s157 = sadd.s32 %s156, 1
      %p160 = scmp.eq.s32.totalorder %s19, 3
      %p161 = scmp.ne.s32.totalorder %s156, %s158
      %p162 = scmp.eq.s32.totalorder %s19, 0
      %p163 = por %p161, %p162
      %p164 = scmp.ne.s32.totalorder %s156, %s158
      %p165 = scmp.eq.s32.totalorder %s24, 3
      %p166 = por %p164, %p165
      %p167 = scmp.ne.s32.totalorder %s158, %s159
      %p168 = scmp.eq.s32.totalorder %s24, 0
      %p169 = por %p167, %p168
      %p170 = scmp.ne.s32.totalorder %s158, %s159
      %p171 = scmp.eq.s32.totalorder %s25, 3
      %p172 = por %p170, %p171
      %p174 = scmp.ne.s32.totalorder %s159, %s173
      %p175 = scmp.eq.s32.totalorder %s25, 0
      %p176 = por %p174, %p175
      %s178 = sadd.s32 %s177, 1
      %p181 = scmp.eq.s32.totalorder %s19, 3
      %p182 = scmp.ne.s32.totalorder %s177, %s179
      %p183 = scmp.eq.s32.totalorder %s19, 0
      %p184 = por %p182, %p183
      %p185 = scmp.ne.s32.totalorder %s177, %s179
      %p186 = scmp.eq.s32.totalorder %s24, 3
      %p187 = por %p185, %p186
      %p188 = scmp.ne.s32.totalorder %s179, %s180
      %p189 = scmp.eq.s32.totalorder %s24, 0
      %p190 = por %p188, %p189
      %p191 = scmp.ne.s32.totalorder %s179, %s180
      %p192 = scmp.eq.s32.totalorder %s25, 3
      %p193 = por %p191, %p192
      %p195 = scmp.ne.s32.totalorder %s180, %s194
      %p196 = scmp.eq.s32.totalorder %s25, 0
      %p197 = por %p195, %p196
      %s199 = sadd.s32 %s198, 1
      %p202 = scmp.eq.s32.totalorder %s19, 3
      %p203 = scmp.ne.s32.totalorder %s198, %s200
      %p204 = scmp.eq.s32.totalorder %s19, 0
      %p205 = por %p203, %p204
      %p206 = scmp.ne.s32.totalorder %s198, %s200
      %p207 = scmp.eq.s32.totalorder %s24, 3
      %p208 = por %p206, %p207
      %p209 = scmp.ne.s32.totalorder %s200, %s201
      %p210 = scmp.eq.s32.totalorder %s24, 0
      %p211 = por %p209, %p210
      %p212 = scmp.ne.s32.totalorder %s200, %s201
      %p213 = scmp.eq.s32.totalorder %s25, 3
      %p214 = por %p212, %p213
      %p216 = scmp.ne.s32.totalorder %s201, %s215
      %p217 = scmp.eq.s32.totalorder %s25, 0
      %p218 = por %p216, %p217
      %s220 = sadd.s32 %s219, 1
      %p223 = scmp.eq.s32.totalorder %s19, 3
      %p224 = scmp.ne.s32.totalorder %s219, %s221
      %p225 = scmp.eq.s32.totalorder %s19, 0
      %p226 = por %p224, %p225
      %p227 = scmp.ne.s32.totalorder %s219, %s221
      %p228 = scmp.eq.s32.totalorder %s24, 3
      %p229 = por %p227, %p228
      %p230 = scmp.ne.s32.totalorder %s221, %s222
      %p231 = scmp.eq.s32.totalorder %s24, 0
      %p232 = por %p230, %p231
      %p233 = scmp.ne.s32.totalorder %s221, %s222
      %p234 = scmp.eq.s32.totalorder %s25, 3
      %p235 = por %p233, %p234
      %p237 = scmp.ne.s32.totalorder %s222, %s236
      %p238 = scmp.eq.s32.totalorder %s25, 0
      %p239 = por %p237, %p238
      %s241 = sadd.s32 %s240, 1
      %p244 = scmp.eq.s32.totalorder %s19, 3
      %p245 = scmp.ne.s32.totalorder %s240, %s242
      %p246 = scmp.eq.s32.totalorder %s19, 0
      %p247 = por %p245, %p246
      %p248 = scmp.ne.s32.totalorder %s240, %s242
      %p249 = scmp.eq.s32.totalorder %s24, 3
      %p250 = por %p248, %p249
      %p251 = scmp.ne.s32.totalorder %s242, %s243
      %p252 = scmp.eq.s32.totalorder %s24, 0
      %p253 = por %p251, %p252
      %p254 = scmp.ne.s32.totalorder %s242, %s243
      %p255 = scmp.eq.s32.totalorder %s25, 3
      %p256 = por %p254, %p255
      %p258 = scmp.ne.s32.totalorder %s243, %s257
      %p259 = scmp.eq.s32.totalorder %s25, 0
      %p260 = por %p258, %p259
      %s262 = sadd.s32 %s261, 1
      %p265 = scmp.eq.s32.totalorder %s19, 3
      %p266 = scmp.ne.s32.totalorder %s261, %s263
      %p267 = scmp.eq.s32.totalorder %s19, 0
      %p268 = por %p266, %p267
      %p269 = scmp.ne.s32.totalorder %s261, %s263
      %p270 = scmp.eq.s32.totalorder %s24, 3
      %p271 = por %p269, %p270
      %p272 = scmp.ne.s32.totalorder %s263, %s264
      %p273 = scmp.eq.s32.totalorder %s24, 0
      %p274 = por %p272, %p273
      %p275 = scmp.ne.s32.totalorder %s263, %s264
      %p276 = scmp.eq.s32.totalorder %s25, 3
      %p277 = por %p275, %p276
      %p279 = scmp.ne.s32.totalorder %s264, %s278
      %p280 = scmp.eq.s32.totalorder %s25, 0
      %p281 = por %p279, %p280
      %s282 = ssub.s32 %s26, %s38
      %s283 = ssub.s32 %s27, %s34
      %s284 = sor.u32 %s282, %s283
      %p285 = scmp.eq.s32.totalorder %s284, 0
      %s287 = sadd.s32 %s286, 1
      %s288 = scalar_select %p285, %s286, %s287
      %p291 = pneg %p285
      %p292 = scmp.eq.s32.totalorder %s19, 3
      %p293 = por %p291, %p292
      %p294 = scmp.ne.s32.totalorder %s286, %s289
      %p295 = scmp.eq.s32.totalorder %s19, 0
      %p296 = por %p294, %p295
      %p297 = scmp.ne.s32.totalorder %s286, %s289
      %p298 = scmp.eq.s32.totalorder %s24, 3
      %p299 = por %p297, %p298
      %p300 = scmp.ne.s32.totalorder %s289, %s290
      %p301 = scmp.eq.s32.totalorder %s24, 0
      %p302 = por %p300, %p301
      %p303 = scmp.ne.s32.totalorder %s289, %s290
      %p304 = scmp.eq.s32.totalorder %s25, 3
      %p305 = por %p303, %p304
      %p307 = scmp.ne.s32.totalorder %s290, %s306
      %p308 = scmp.eq.s32.totalorder %s25, 0
      %p309 = por %p307, %p308
      %p310 = scmp.le.s32.totalorder 1, %s19
      %p311 = scmp.lt.s32.totalorder %s19, 5
      %p312 = pnand %p310, %p311
      %p313 = pneg %p312
      // Predicated region
      $region9: #{tpu_custom_call.1} parent=5 // pred_check
        _
      $region10: #{tpu_custom_call.1} parent=5 // pred_check_branch
        %315 = sbr.rel (%p312) target = $region12
      $region11: #{tpu_custom_call.1} parent=5 // pred_region
        %s316 = ssub.s32 %s19, 1
        // Predicated region
        $region13: #{tpu_custom_call.1} parent=11 // pred_check
          %p317 = pneg %p52
        $region14: #{tpu_custom_call.1} parent=11 // pred_check_branch
          %319 = sbr.rel (%p317) target = $region16
        $region15: #{tpu_custom_call.1} parent=11 // pred_region
          _
        $region16: #{tpu_custom_call.1} parent=11 // pred_fallthru
          _
        // Predicated region
        $region17: #{tpu_custom_call.1} parent=11 // pred_check
          %p320 = pneg %p169
        $region18: #{tpu_custom_call.1} parent=11 // pred_check_branch
          %322 = sbr.rel (%p320) target = $region20
        $region19: #{tpu_custom_call.1} parent=11 // pred_region
          _
        $region20: #{tpu_custom_call.1} parent=11 // pred_fallthru
          _
        // Predicated region
        $region21: #{tpu_custom_call.1} parent=11 // pred_check
          %p323 = pneg %p190
        $region22: #{tpu_custom_call.1} parent=11 // pred_check_branch
          %325 = sbr.rel (%p323) target = $region24
        $region23: #{tpu_custom_call.1} parent=11 // pred_region
          _
        $region24: #{tpu_custom_call.1} parent=11 // pred_fallthru
          _
        // Predicated region
        $region25: #{tpu_custom_call.1} parent=11 // pred_check
          %p326 = pneg %p211
        $region26: #{tpu_custom_call.1} parent=11 // pred_check_branch
          %328 = sbr.rel (%p326) target = $region28
        $region27: #{tpu_custom_call.1} parent=11 // pred_region
          _
        $region28: #{tpu_custom_call.1} parent=11 // pred_fallthru
          _
        // Predicated region
        $region29: #{tpu_custom_call.1} parent=11 // pred_check
          %p329 = pneg %p232
        $region30: #{tpu_custom_call.1} parent=11 // pred_check_branch
          %331 = sbr.rel (%p329) target = $region32
        $region31: #{tpu_custom_call.1} parent=11 // pred_region
          _
        $region32: #{tpu_custom_call.1} parent=11 // pred_fallthru
          _
        // Predicated region
        $region33: #{tpu_custom_call.1} parent=11 // pred_check
          %p332 = pneg %p253
        $region34: #{tpu_custom_call.1} parent=11 // pred_check_branch
          %334 = sbr.rel (%p332) target = $region36
        $region35: #{tpu_custom_call.1} parent=11 // pred_region
          _
        $region36: #{tpu_custom_call.1} parent=11 // pred_fallthru
          _
        // Predicated region
        $region37: #{tpu_custom_call.1} parent=11 // pred_check
          %p335 = pneg %p274
        $region38: #{tpu_custom_call.1} parent=11 // pred_check_branch
          %337 = sbr.rel (%p335) target = $region40
        $region39: #{tpu_custom_call.1} parent=11 // pred_region
          _
        $region40: #{tpu_custom_call.1} parent=11 // pred_fallthru
          _
      $region12: #{tpu_custom_call.1} parent=5 // pred_fallthru
        _
      %p338 = scmp.lt.s32.totalorder %s19, 4
      // Predicated region
      $region41: #{tpu_custom_call.1} parent=5 // pred_check
        %p339 = pneg %p338
      $region42: #{tpu_custom_call.1} parent=5 // pred_check_branch
        %341 = sbr.rel (%p339) target = $region44
      $region43: #{tpu_custom_call.1} parent=5 // pred_region
        // Predicated region
        $region45: #{tpu_custom_call.1} parent=43 // pred_check
          %p342 = pneg %p80
        $region46: #{tpu_custom_call.1} parent=43 // pred_check_branch
          %344 = sbr.rel (%p342) target = $region48
        $region47: #{tpu_custom_call.1} parent=43 // pred_region
          %s345 = ssub.s32 %s27, 1
          %p346 = scmp.gt.s32.totalorder %s345, 0
          %s347 = scalar_select %p346, %s345, 0
          %p348 = scmp.lt.s32.totalorder %s26, 1
          %s349 = scalar_select %p348, %s26, 1
          %p350 = scmp.lt.s32.totalorder %s347, 1
          %s351 = scalar_select %p350, %s347, 1
          %s352 = smul.addr %s349, 2
          %s353 = sadd.s32 %s351, %s352
          %s354 = smul.addr %s353, 2
          %s355 = scalar_lea.vmem %s1, %s354
          %s356 = ssub.s32 %s27, 1
          %p357 = scmp.gt.s32.totalorder %s356, 0
          %s358 = scalar_select %p357, %s356, 0
        $region48: #{tpu_custom_call.1} parent=43 // pred_fallthru
          _
        // Predicated region
        $region49: #{tpu_custom_call.1} parent=43 // pred_check
          %p359 = pneg %p108
        $region50: #{tpu_custom_call.1} parent=43 // pred_check_branch
          %361 = sbr.rel (%p359) target = $region52
        $region51: #{tpu_custom_call.1} parent=43 // pred_region
          %p362 = scmp.lt.s32.totalorder %s26, 1
          %s363 = scalar_select %p362, %s26, 1
          %p364 = scmp.lt.s32.totalorder %s27, 1
          %s365 = scalar_select %p364, %s27, 1
          %s366 = smul.addr %s363, 2
          %s367 = sadd.s32 %s365, %s366
          %s368 = smul.addr %s367, 2
          %s369 = scalar_lea.vmem %s2, %s368
        $region52: #{tpu_custom_call.1} parent=43 // pred_fallthru
          _
        // Predicated region
        $region53: #{tpu_custom_call.1} parent=43 // pred_check
          %p370 = pneg %p142
        $region54: #{tpu_custom_call.1} parent=43 // pred_check_branch
          %372 = sbr.rel (%p370) target = $region56
        $region55: #{tpu_custom_call.1} parent=43 // pred_region
          %s373 = sadd.s32 %s27, 1
          %p374 = scmp.lt.s32.totalorder %s373, 1
          %s375 = scalar_select %p374, %s373, 1
          %p376 = scmp.lt.s32.totalorder %s26, 1
          %s377 = scalar_select %p376, %s26, 1
          %p378 = scmp.lt.s32.totalorder %s375, 1
          %s379 = scalar_select %p378, %s375, 1
          %s380 = smul.addr %s377, 2
          %s381 = sadd.s32 %s379, %s380
          %s382 = smul.addr %s381, 2
          %s383 = scalar_lea.vmem %s3, %s382
          %s384 = sadd.s32 %s27, 1
          %p385 = scmp.lt.s32.totalorder %s384, 1
          %s386 = scalar_select %p385, %s384, 1
        $region56: #{tpu_custom_call.1} parent=43 // pred_fallthru
          _
      $region44: #{tpu_custom_call.1} parent=5 // pred_fallthru
        _
      %p387 = scmp.le.s32.totalorder 1, %s19
      %p388 = scmp.lt.s32.totalorder %s19, 5
      %p389 = pnand %p387, %p388
      %p390 = pneg %p389
      // Predicated region
      $region57: #{tpu_custom_call.1} parent=5 // pred_check
        _
      $region58: #{tpu_custom_call.1} parent=5 // pred_check_branch
        %392 = sbr.rel (%p389) target = $region60
      $region59: #{tpu_custom_call.1} parent=5 // pred_region
        %s393 = ssub.s32 %s19, 1
        %p394 = pneg %p52
        %p395 = pneg %p49
        %s396 = ssub.s32 %s29, 1
        %p397 = scmp.gt.s32.totalorder %s396, 0
        %s398 = scalar_select %p397, %s396, 0
        %p399 = scmp.lt.s32.totalorder %s28, 1
        %s400 = scalar_select %p399, %s28, 1
        %p401 = scmp.lt.s32.totalorder %s398, 1
        %s402 = scalar_select %p401, %s398, 1
        %s403 = smul.addr %s400, 2
        %s404 = sadd.s32 %s402, %s403
        %s405 = smul.addr %s404, 2
        %s406 = scalar_lea.vmem %s1, %s405
        %p407 = pneg %p86
        %p408 = pneg %p83
        %p409 = scmp.lt.s32.totalorder %s28, 1
        %s410 = scalar_select %p409, %s28, 1
        %p411 = scmp.lt.s32.totalorder %s29, 1
        %s412 = scalar_select %p411, %s29, 1
        %s413 = smul.addr %s410, 2
        %s414 = sadd.s32 %s412, %s413
        %s415 = smul.addr %s414, 2
        %s416 = scalar_lea.vmem %s2, %s415
        %p417 = pneg %p114
        %p418 = pneg %p111
        %s419 = sadd.s32 %s29, 1
        %p420 = scmp.lt.s32.totalorder %s419, 1
        %s421 = scalar_select %p420, %s419, 1
        %p422 = scmp.lt.s32.totalorder %s28, 1
        %s423 = scalar_select %p422, %s28, 1
        %p424 = scmp.lt.s32.totalorder %s421, 1
        %s425 = scalar_select %p424, %s421, 1
        %s426 = smul.addr %s423, 2
        %s427 = sadd.s32 %s425, %s426
        %s428 = smul.addr %s427, 2
        %s429 = scalar_lea.vmem %s3, %s428
        %p430 = pneg %p148
        %p431 = pneg %p145
        %p432 = pneg %p169
        %p433 = pneg %p166
        %p434 = pneg %p190
        %p435 = pneg %p187
        %p436 = pneg %p211
        %p437 = pneg %p208
        %p438 = pneg %p232
        %p439 = pneg %p229
        %p440 = pneg %p253
        %p441 = pneg %p250
        %p442 = pneg %p274
        %p443 = pneg %p271
        %p444 = pneg %p302
        %p445 = pneg %p299
        %s446 = sand.u32 %s289, 1
        %s447 = scalar_lea.sflag [#allocation3], %s446
        %s448 = sand.u32 %s289, 1
        %s449 = smul.addr %s448, 8
        %s450 = scalar_lea.vmem [#allocation2], %s449
        %s451 = ssub.s32 %s29, 1
        %p452 = scmp.gt.s32.totalorder %s451, 0
        %s453 = scalar_select %p452, %s451, 0
        %p454 = scmp.lt.s32.totalorder %s28, 1
        %s455 = scalar_select %p454, %s28, 1
        %p456 = scmp.lt.s32.totalorder %s453, 1
        %s457 = scalar_select %p456, %s453, 1
        %s458 = smul.addr %s455, 2
        %s459 = sadd.s32 %s457, %s458
        %s460 = smul.addr %s459, 2
        %s461 = scalar_lea.vmem %s1, %s460
        %s462 = ssub.s32 %s29, 1
        %p463 = scmp.gt.s32.totalorder %s462, 0
        %s464 = scalar_select %p463, %s462, 0
        %p465 = scmp.lt.s32.totalorder %s28, 1
        %s466 = scalar_select %p465, %s28, 1
        %p467 = scmp.lt.s32.totalorder %s29, 1
        %s468 = scalar_select %p467, %s29, 1
        %s469 = smul.addr %s466, 2
        %s470 = sadd.s32 %s468, %s469
        %s471 = smul.addr %s470, 2
        %s472 = scalar_lea.vmem %s2, %s471
        %s473 = sadd.s32 %s29, 1
        %p474 = scmp.lt.s32.totalorder %s473, 1
        %s475 = scalar_select %p474, %s473, 1
        %p476 = scmp.lt.s32.totalorder %s28, 1
        %s477 = scalar_select %p476, %s28, 1
        %p478 = scmp.lt.s32.totalorder %s475, 1
        %s479 = scalar_select %p478, %s475, 1
        %s480 = smul.addr %s477, 2
        %s481 = sadd.s32 %s479, %s480
        %s482 = smul.addr %s481, 2
        %s483 = scalar_lea.vmem %s3, %s482
        %s484 = sadd.s32 %s29, 1
        %p485 = scmp.lt.s32.totalorder %s484, 1
        %s486 = scalar_select %p485, %s484, 1
        %v490 = vld [vmem:[%s0] sm:$0x7]
        %s491 = ssub.s32 %s29, 1
        %s492 = smul.u32 %s491, 8
        %v493 = vstv %s492
        %v494 = vadd.s32 %v490, %v493
        %vm495 = vcmp.ge.s32.totalorder %v494, 0
        %vm496 = vcmp.lt.s32.totalorder %v494, 16
        %vm497 = vmand %vm495, %vm496
        %v498 = vsub.s32 4293918720, %v494
        %v499 = vsel %vm497, %v494, %v498
        %v500 = vperm.slane %v499, 2
        %501 = vrot.lane.b32.xlu0 %v500, 1
        %v502 = vpop.permute.xlu0 %501
        %v503 = vperm.slane %v499, 0
        %v504 = vperm.slane %v499, 1
        %505 = vrot.lane.b32.xlu0 %v503, 1
        %v506 = vpop.permute.xlu0 %505
        %507 = vrot.lane.b32.xlu0 %v504, 1
        %v508 = vpop.permute.xlu0 %507
        %vm509 = vcmask 7168
        %v510 = vsel %vm509, %v506, %v508
        %v511 = vsel %vm509, %v508, %v502
        %v512 = vsel %vm509, %v502, %v506
        %vm513 = vcmp.eq.s32.totalorder %v512, %v503
        %vm514 = vcmp.eq.s32.totalorder %v510, %v504
        %vm515 = vcmp.eq.s32.totalorder %v511, %v500
        %516 = vrot.lane.b32.xlu0 %v503, 127
        %v517 = vpop.permute.xlu0 %516
        %518 = vrot.lane.b32.xlu0 %v504, 127
        %v519 = vpop.permute.xlu0 %518
        %520 = vrot.lane.b32.xlu0 %v500, 127
        %v521 = vpop.permute.xlu0 %520
        %vm522 = vcmask 1039360
        %v523 = vsel %vm522, %v517, %v519
        %v524 = vsel %vm522, %v519, %v521
        %v525 = vsel %vm522, %v521, %v517
        %vm526 = vcmp.eq.s32.totalorder %v523, %v503
        %vm527 = vcmp.eq.s32.totalorder %v524, %v504
        %vm528 = vcmp.eq.s32.totalorder %v525, %v500
        %529 = vrot.lane.b32.xlu0 %v500, 16
        %v530 = vpop.permute.xlu0 %529
        %531 = vrot.lane.b32.xlu0 %v503, 16
        %v532 = vpop.permute.xlu0 %531
        %533 = vrot.lane.b32.xlu0 %v504, 16
        %v534 = vpop.permute.xlu0 %533
        %vm535 = vcmask 130048
        %v536 = vsel %vm535, %v532, %v534
        %v537 = vsel %vm535, %v534, %v530
        %v538 = vsel %vm535, %v530, %v532
        %v539 = vsub.s32 %v538, %v503
        %v540 = vsub.s32 %v536, %v504
        %v541 = vsub.s32 %v537, %v500
        %vm542 = vcmp.eq.s32.totalorder %v539, 1
        %vm543 = vcmp.eq.s32.totalorder %v540, 1
        %vm544 = vcmp.eq.s32.totalorder %v541, 1
        %vm545 = vcmp.eq.s32.totalorder %v539, 4294967295
        %vm546 = vcmp.eq.s32.totalorder %v540, 4294967295
        %vm547 = vcmp.eq.s32.totalorder %v541, 4294967295
        %vm548 = vmor %vm542, %vm545
        %vm549 = vmor %vm543, %vm546
        %vm550 = vmor %vm544, %vm547
        %551 = vrot.lane.b32.xlu0 %v503, 112
        %v552 = vpop.permute.xlu0 %551
        %553 = vrot.lane.b32.xlu0 %v504, 112
        %v554 = vpop.permute.xlu0 %553
        %555 = vrot.lane.b32.xlu0 %v500, 112
        %v556 = vpop.permute.xlu0 %555
        %vm557 = vcmask 916480
        %v558 = vsel %vm557, %v552, %v554
        %v559 = vsel %vm557, %v554, %v556
        %v560 = vsel %vm557, %v556, %v552
        %v561 = vsub.s32 %v558, %v503
        %v562 = vsub.s32 %v559, %v504
        %v563 = vsub.s32 %v560, %v500
        %vm564 = vcmp.eq.s32.totalorder %v561, 1
        %vm565 = vcmp.eq.s32.totalorder %v562, 1
        %vm566 = vcmp.eq.s32.totalorder %v563, 1
        %vm567 = vcmp.eq.s32.totalorder %v561, 4294967295
        %vm568 = vcmp.eq.s32.totalorder %v562, 4294967295
        %vm569 = vcmp.eq.s32.totalorder %v563, 4294967295
        %vm570 = vmor %vm564, %vm567
        %vm571 = vmor %vm565, %vm568
        %vm572 = vmor %vm566, %vm569
        %573 = vrot.lane.b32.xlu0 %v500, 2
        %v574 = vpop.permute.xlu0 %573
        %575 = vrot.lane.b32.xlu0 %v503, 2
        %v576 = vpop.permute.xlu0 %575
        %577 = vrot.lane.b32.xlu0 %v504, 2
        %v578 = vpop.permute.xlu0 %577
        %vm579 = vcmask 15360
        %v580 = vsel %vm579, %v576, %v578
        %v581 = vsel %vm579, %v578, %v574
        %v582 = vsel %vm579, %v574, %v576
        %vm583 = vcmp.eq.s32.totalorder %v582, %v503
        %vm584 = vcmp.eq.s32.totalorder %v580, %v504
        %vm585 = vcmp.eq.s32.totalorder %v581, %v500
        %586 = vrot.lane.b32.xlu0 %v503, 126
        %v587 = vpop.permute.xlu0 %586
        %588 = vrot.lane.b32.xlu0 %v504, 126
        %v589 = vpop.permute.xlu0 %588
        %590 = vrot.lane.b32.xlu0 %v500, 126
        %v591 = vpop.permute.xlu0 %590
        %vm592 = vcmask 1031168
        %v593 = vsel %vm592, %v587, %v589
        %v594 = vsel %vm592, %v589, %v591
        %v595 = vsel %vm592, %v591, %v587
        %vm596 = vcmp.eq.s32.totalorder %v593, %v503
        %vm597 = vcmp.eq.s32.totalorder %v594, %v504
        %vm598 = vcmp.eq.s32.totalorder %v595, %v500
        %599 = vrot.lane.b32.xlu0 %v500, 32
        %v600 = vpop.permute.xlu0 %599
        %601 = vrot.lane.b32.xlu0 %v503, 32
        %v602 = vpop.permute.xlu0 %601
        %603 = vrot.lane.b32.xlu0 %v504, 32
        %v604 = vpop.permute.xlu0 %603
        %vm605 = vcmask 261120
        %v606 = vsel %vm605, %v602, %v604
        %v607 = vsel %vm605, %v604, %v600
        %v608 = vsel %vm605, %v600, %v602
        %v609 = vsub.s32 %v608, %v503
        %v610 = vsub.s32 %v606, %v504
        %v611 = vsub.s32 %v607, %v500
        %vm612 = vcmp.eq.s32.totalorder %v609, 2
        %vm613 = vcmp.eq.s32.totalorder %v610, 2
        %vm614 = vcmp.eq.s32.totalorder %v611, 2
        %vm615 = vcmp.eq.s32.totalorder %v609, 4294967294
        %vm616 = vcmp.eq.s32.totalorder %v610, 4294967294
        %vm617 = vcmp.eq.s32.totalorder %v611, 4294967294
        %vm618 = vmor %vm612, %vm615
        %vm619 = vmor %vm613, %vm616
        %vm620 = vmor %vm614, %vm617
        %621 = vrot.lane.b32.xlu0 %v503, 96
        %v622 = vpop.permute.xlu0 %621
        %623 = vrot.lane.b32.xlu0 %v504, 96
        %v624 = vpop.permute.xlu0 %623
        %625 = vrot.lane.b32.xlu0 %v500, 96
        %v626 = vpop.permute.xlu0 %625
        %vm627 = vcmask 785408
        %v628 = vsel %vm627, %v622, %v624
        %v629 = vsel %vm627, %v624, %v626
        %v630 = vsel %vm627, %v626, %v622
        %v631 = vsub.s32 %v628, %v503
        %v632 = vsub.s32 %v629, %v504
        %v633 = vsub.s32 %v630, %v500
        %vm634 = vcmp.eq.s32.totalorder %v631, 2
        %vm635 = vcmp.eq.s32.totalorder %v632, 2
        %vm636 = vcmp.eq.s32.totalorder %v633, 2
        %vm637 = vcmp.eq.s32.totalorder %v631, 4294967294
        %vm638 = vcmp.eq.s32.totalorder %v632, 4294967294
        %vm639 = vcmp.eq.s32.totalorder %v633, 4294967294
        %vm640 = vmor %vm634, %vm637
        %vm641 = vmor %vm635, %vm638
        %vm642 = vmor %vm636, %vm639
        %v643 = vld [vmem:[%s461] sm:$0x3]
        %v644 = vld [vmem:[%s472] sm:$0x3]
        %v645 = vld [vmem:[%s483] sm:$0x3]
        %v646 = vld [vmem:[%s4] sm:$0x1]
        %vm647 = vcmask 31744
        %v649 = vsel %vm647, %v646, 0
        %vm651 = vcmask 1041408
        %v653 = vsel %vm651, %v643, 0
        %v656 = vsel %vm651, %v644, 0
        %v659 = vsel %vm651, %v645, 0
        %661 = vmatpush.bf16.msra.mxu0 0
        %662 = vmatpush.bf16.msra.mxu0 0
        %663 = vmatpush.bf16.msra.mxu0 0
        %664 = vmatpush.bf16.msra.mxu0 0
        %665 = vmatpush.bf16.msra.mxu0 0
        %666 = vmatpush.bf16.msra.mxu0 0
        %667 = vmatpush.bf16.msra.mxu0 0
        %668 = vmatpush.bf16.msra.mxu0 %v653
        %669 = vmatmul.bf16.gmra.mxu0 %v649
        %v670 = vpop.f32.mrf.mxu0
        %v671 = vadd.f32 0.0, %v670
        %v672 = vpop.f32.mrf.mxu0
        %673 = vdwg.mxu0
        %674 = vmatpush.bf16.msra.mxu0 0
        %675 = vmatpush.bf16.msra.mxu0 0
        %676 = vmatpush.bf16.msra.mxu0 0
        %677 = vmatpush.bf16.msra.mxu0 0
        %678 = vmatpush.bf16.msra.mxu0 0
        %679 = vmatpush.bf16.msra.mxu0 0
        %680 = vmatpush.bf16.msra.mxu0 0
        %681 = vmatpush.bf16.msra.mxu0 %v656
        %682 = vmatmul.bf16.gmra.mxu0 %v649
        %v683 = vpop.f32.mrf.mxu0
        %v684 = vadd.f32 0.0, %v683
        %v685 = vpop.f32.mrf.mxu0
        %686 = vdwg.mxu0
        %687 = vmatpush.bf16.msra.mxu0 0
        %688 = vmatpush.bf16.msra.mxu0 0
        %689 = vmatpush.bf16.msra.mxu0 0
        %690 = vmatpush.bf16.msra.mxu0 0
        %691 = vmatpush.bf16.msra.mxu0 0
        %692 = vmatpush.bf16.msra.mxu0 0
        %693 = vmatpush.bf16.msra.mxu0 0
        %694 = vmatpush.bf16.msra.mxu0 %v659
        %695 = vmatmul.bf16.gmra.mxu0 %v649
        %v696 = vpop.f32.mrf.mxu0
        %v697 = vadd.f32 0.0, %v696
        %v698 = vpop.f32.mrf.mxu0
        %699 = vdwg.mxu0
        %v700 = vld [vmem:[%s5] sm:$0x3]
        %702 = vset.pattern.permute.xlu0 0
        %703 = vperm.xlu0 %702, %v700
        %v704 = vpop.permute.xlu0 %703
        %v706 = vmul.f32 %v671, %v704
        %v707 = vmul.f32 %v684, %v704
        %v708 = vmul.f32 %v697, %v704
        %v709 = vld [vmem:[%s6] sm:$0x3]
        %711 = vset.pattern.permute.xlu0 0
        %712 = vperm.xlu0 %711, %v709
        %v713 = vpop.permute.xlu0 %712
        %v715 = vadd.f32 %v706, %v713
        %v716 = vadd.f32 %v707, %v713
        %v717 = vadd.f32 %v708, %v713
        %v718 = vxor.u32 %v715, 2147483648
        %v719 = vxor.u32 %v716, 2147483648
        %v720 = vxor.u32 %v717, 2147483648
        %v721 = vmul.f32 %v718, 1.442695
        %v722 = vpow.pop %v721
        %v723 = vmul.f32 %v719, 1.442695
        %v724 = vpow.pop %v723
        %v725 = vmul.f32 %v720, 1.442695
        %v726 = vpow.pop %v725
        %v727 = vadd.f32 %v722, 1.0
        %v728 = vadd.f32 %v724, 1.0
        %v729 = vadd.f32 %v726, 1.0
        %v730 = vrcp.pop %v727
        %v731 = vmul.f32 %v727, %v730
        %v732 = vsub.f32 1.0, %v731
        %v733 = vmul.f32 %v730, %v732
        %v734 = vadd.f32 %v730, %v733
        %vm735 = vweird.f32 %v727
        %vm736 = vweird.f32 %v730
        %vm737 = vmor %vm735, %vm736
        %v738 = vsel %vm737, %v730, %v734
        %v739 = vand.u32 2147483647, %v727
        %vm740 = vcmp.eq.f32.partialorder %v739, 8.507059e+37
        %v741 = vand.u32 %v727, 2147483648
        %v742 = vor.u32 1.1754944e-38, %v741
        %v743 = vsel %vm740, %v742, %v738
        %v744 = vmul.f32 1.0, %v743
        %v745 = vrcp.pop %v728
        %v746 = vmul.f32 %v728, %v745
        %v747 = vsub.f32 1.0, %v746
        %v748 = vmul.f32 %v745, %v747
        %v749 = vadd.f32 %v745, %v748
        %vm750 = vweird.f32 %v728
        %vm751 = vweird.f32 %v745
        %vm752 = vmor %vm750, %vm751
        %v753 = vsel %vm752, %v745, %v749
        %v754 = vand.u32 2147483647, %v728
        %vm755 = vcmp.eq.f32.partialorder %v754, 8.507059e+37
        %v756 = vand.u32 %v728, 2147483648
        %v757 = vor.u32 1.1754944e-38, %v756
        %v758 = vsel %vm755, %v757, %v753
        %v759 = vmul.f32 1.0, %v758
        %v760 = vrcp.pop %v729
        %v761 = vmul.f32 %v729, %v760
        %v762 = vsub.f32 1.0, %v761
        %v763 = vmul.f32 %v760, %v762
        %v764 = vadd.f32 %v760, %v763
        %vm765 = vweird.f32 %v729
        %vm766 = vweird.f32 %v760
        %vm767 = vmor %vm765, %vm766
        %v768 = vsel %vm767, %v760, %v764
        %v769 = vand.u32 2147483647, %v729
        %vm770 = vcmp.eq.f32.partialorder %v769, 8.507059e+37
        %v771 = vand.u32 %v729, 2147483648
        %v772 = vor.u32 1.1754944e-38, %v771
        %v773 = vsel %vm770, %v772, %v768
        %v774 = vmul.f32 1.0, %v773
        %v775 = vmul.f32 %v715, %v744
        %v776 = vmul.f32 %v716, %v759
        %v777 = vmul.f32 %v717, %v774
        %v778 = vpack.c.bf16 %v776, %v775
        %v779 = vpack.c.bf16 %v777, %v777
        %v780 = vld [vmem:[%s7] sm:$0xf]
        %v782 = vunpack.c.l.b16 %v779
        %v783 = vpack.c.b16 %v782, %v782
        %784 = vrot.lane.b32.xlu0 %v783, 1
        %v785 = vpop.permute.xlu0 %784
        %v787 = vunpack.c.l.b16 %v778
        %v788 = vunpack.c.h.b16 %v778
        %v789 = vpack.c.b16 %v787, %v787
        %v790 = vpack.c.b16 %v788, %v788
        %791 = vrot.lane.b32.xlu0 %v789, 1
        %v792 = vpop.permute.xlu0 %791
        %793 = vrot.lane.b32.xlu0 %v790, 1
        %v794 = vpop.permute.xlu0 %793
        %vm795 = vcmask 7168
        %v796 = vsel %vm795, %v792, %v794
        %v797 = vsel %vm795, %v794, %v785
        %v802 = vsel %vm509, %v785, %v792
        %p805 = scmp.ne.f32.partialorder -3e+38, -3e+38
        %s806 = sshrl.u32 -3e+38, 16
        %s807 = sand.u32 %s806, 1
        %s808 = sadd.s32 32767, %s807
        %s809 = sadd.s32 -3e+38, %s808
        %s810 = sand.u32 %s809, 4294901760
        %s811 = scalar_select %p805, 2143289344, %s810
        %s813 = sshrl.u32 %s811, 16
        %v814 = vsel %vm513, 1, 0
        %v815 = vsel %vm514, 1, 0
        %v816 = vsel %vm515, 1, 0
        %v817 = vperm.slane %v814, 0
        %v818 = vperm.slane %v815, 0
        %v819 = vperm.slane %v816, 0
        %vm820 = vcmp.eq.s32.totalorder %v817, 1
        %vm821 = vcmp.eq.s32.totalorder %v818, 1
        %vm822 = vcmp.eq.s32.totalorder %v819, 1
        %s823 = sshll.u32 %s813, 16
        %s824 = sor.u32 %s813, %s823
        %v825 = vstv %s824
        %vm827 = vmpackc.low %vm821, %vm820
        %vm828 = vmpackc.low %vm822, %vm822
        %v829 = vsel %vm827, 65537, 0
        %v830 = vsel %vm828, 65537, 0
        %v831 = vperm.slane %v829, 0
        %v832 = vperm.slane %v829, 4
        %v833 = vperm.slane %v830, 0
        %v834 = vunpack.c.l.b16 %v831
        %v835 = vunpack.c.h.b16 %v831
        %v836 = vunpack.c.l.b16 0
        %v837 = vunpack.c.h.b16 0
        %vm838 = vcmp.ne.s32.totalorder %v834, %v836
        %vm839 = vcmp.ne.s32.totalorder %v835, %v837
        %vm840 = vmpackc.low %vm839, %vm838
        %v841 = vunpack.c.l.b16 %v832
        %v842 = vunpack.c.h.b16 %v832
        %v843 = vunpack.c.l.b16 0
        %v844 = vunpack.c.h.b16 0
        %vm845 = vcmp.ne.s32.totalorder %v841, %v843
        %vm846 = vcmp.ne.s32.totalorder %v842, %v844
        %vm847 = vmpackc.low %vm846, %vm845
        %v848 = vunpack.c.l.b16 %v833
        %v849 = vunpack.c.h.b16 %v833
        %v850 = vunpack.c.l.b16 0
        %v851 = vunpack.c.h.b16 0
        %vm852 = vcmp.ne.s32.totalorder %v848, %v850
        %vm853 = vcmp.ne.s32.totalorder %v849, %v851
        %vm854 = vmpackc.low %vm853, %vm852
        %v855 = vsel %vm840, %v802, %v825
        %v856 = vsel %vm847, %v796, %v825
        %v857 = vsel %vm854, %v797, %v825
        %v858 = vunpack.c.l.bf16 %v778
        %v859 = vunpack.c.h.bf16 %v778
        %v860 = vunpack.c.l.bf16 %v779
        %v861 = vunpack.c.l.bf16 %v855
        %v862 = vunpack.c.l.bf16 %v856
        %v863 = vunpack.c.l.bf16 %v857
        %v864 = vmax.f32 %v858, %v861
        %v865 = vmax.f32 %v859, %v862
        %v866 = vmax.f32 %v860, %v863
        %v867 = vpack.c.bf16 %v865, %v864
        %v868 = vpack.c.bf16 %v866, %v866
        %869 = vrot.lane.b32.xlu0 %v789, 127
        %v870 = vpop.permute.xlu0 %869
        %871 = vrot.lane.b32.xlu0 %v790, 127
        %v872 = vpop.permute.xlu0 %871
        %873 = vrot.lane.b32.xlu0 %v783, 127
        %v874 = vpop.permute.xlu0 %873
        %vm875 = vcmask 1039360
        %v876 = vsel %vm875, %v870, %v872
        %v877 = vsel %vm875, %v872, %v874
        %v882 = vsel %vm522, %v874, %v870
        %v884 = vsel %vm526, 1, 0
        %v885 = vsel %vm527, 1, 0
        %v886 = vsel %vm528, 1, 0
        %v887 = vperm.slane %v884, 0
        %v888 = vperm.slane %v885, 0
        %v889 = vperm.slane %v886, 0
        %vm890 = vcmp.eq.s32.totalorder %v887, 1
        %vm891 = vcmp.eq.s32.totalorder %v888, 1
        %vm892 = vcmp.eq.s32.totalorder %v889, 1
        %vm893 = vmpackc.low %vm891, %vm890
        %vm894 = vmpackc.low %vm892, %vm892
        %v895 = vsel %vm893, 65537, 0
        %v896 = vsel %vm894, 65537, 0
        %v897 = vperm.slane %v895, 0
        %v898 = vperm.slane %v895, 4
        %v899 = vperm.slane %v896, 0
        %v900 = vunpack.c.l.b16 %v897
        %v901 = vunpack.c.h.b16 %v897
        %v902 = vunpack.c.l.b16 0
        %v903 = vunpack.c.h.b16 0
        %vm904 = vcmp.ne.s32.totalorder %v900, %v902
        %vm905 = vcmp.ne.s32.totalorder %v901, %v903
        %vm906 = vmpackc.low %vm905, %vm904
        %v907 = vunpack.c.l.b16 %v898
        %v908 = vunpack.c.h.b16 %v898
        %v909 = vunpack.c.l.b16 0
        %v910 = vunpack.c.h.b16 0
        %vm911 = vcmp.ne.s32.totalorder %v907, %v909
        %vm912 = vcmp.ne.s32.totalorder %v908, %v910
        %vm913 = vmpackc.low %vm912, %vm911
        %v914 = vunpack.c.l.b16 %v899
        %v915 = vunpack.c.h.b16 %v899
        %v916 = vunpack.c.l.b16 0
        %v917 = vunpack.c.h.b16 0
        %vm918 = vcmp.ne.s32.totalorder %v914, %v916
        %vm919 = vcmp.ne.s32.totalorder %v915, %v917
        %vm920 = vmpackc.low %vm919, %vm918
        %v921 = vsel %vm906, %v876, %v825
        %v922 = vsel %vm913, %v877, %v825
        %v923 = vsel %vm920, %v882, %v825
        %v924 = vunpack.c.l.bf16 %v867
        %v925 = vunpack.c.h.bf16 %v867
        %v926 = vunpack.c.l.bf16 %v868
        %v927 = vunpack.c.l.bf16 %v921
        %v928 = vunpack.c.l.bf16 %v922
        %v929 = vunpack.c.l.bf16 %v923
        %v930 = vmax.f32 %v924, %v927
        %v931 = vmax.f32 %v925, %v928
        %v932 = vmax.f32 %v926, %v929
        %v933 = vpack.c.bf16 %v931, %v930
        %v934 = vpack.c.bf16 %v932, %v932
        %935 = vrot.lane.b32.xlu0 %v783, 2
        %v936 = vpop.permute.xlu0 %935
        %937 = vrot.lane.b32.xlu0 %v789, 2
        %v938 = vpop.permute.xlu0 %937
        %939 = vrot.lane.b32.xlu0 %v790, 2
        %v940 = vpop.permute.xlu0 %939
        %vm941 = vcmask 15360
        %v942 = vsel %vm941, %v938, %v940
        %v943 = vsel %vm941, %v940, %v936
        %v948 = vsel %vm579, %v936, %v938
        %v950 = vsel %vm583, 1, 0
        %v951 = vsel %vm584, 1, 0
        %v952 = vsel %vm585, 1, 0
        %v953 = vperm.slane %v950, 0
        %v954 = vperm.slane %v951, 0
        %v955 = vperm.slane %v952, 0
        %vm956 = vcmp.eq.s32.totalorder %v953, 1
        %vm957 = vcmp.eq.s32.totalorder %v954, 1
        %vm958 = vcmp.eq.s32.totalorder %v955, 1
        %vm959 = vmpackc.low %vm957, %vm956
        %vm960 = vmpackc.low %vm958, %vm958
        %v961 = vsel %vm959, 65537, 0
        %v962 = vsel %vm960, 65537, 0
        %v963 = vperm.slane %v961, 0
        %v964 = vperm.slane %v961, 4
        %v965 = vperm.slane %v962, 0
        %v966 = vunpack.c.l.b16 %v963
        %v967 = vunpack.c.h.b16 %v963
        %v968 = vunpack.c.l.b16 0
        %v969 = vunpack.c.h.b16 0
        %vm970 = vcmp.ne.s32.totalorder %v966, %v968
        %vm971 = vcmp.ne.s32.totalorder %v967, %v969
        %vm972 = vmpackc.low %vm971, %vm970
        %v973 = vunpack.c.l.b16 %v964
        %v974 = vunpack.c.h.b16 %v964
        %v975 = vunpack.c.l.b16 0
        %v976 = vunpack.c.h.b16 0
        %vm977 = vcmp.ne.s32.totalorder %v973, %v975
        %vm978 = vcmp.ne.s32.totalorder %v974, %v976
        %vm979 = vmpackc.low %vm978, %vm977
        %v980 = vunpack.c.l.b16 %v965
        %v981 = vunpack.c.h.b16 %v965
        %v982 = vunpack.c.l.b16 0
        %v983 = vunpack.c.h.b16 0
        %vm984 = vcmp.ne.s32.totalorder %v980, %v982
        %vm985 = vcmp.ne.s32.totalorder %v981, %v983
        %vm986 = vmpackc.low %vm985, %vm984
        %v987 = vsel %vm972, %v948, %v825
        %v988 = vsel %vm979, %v942, %v825
        %v989 = vsel %vm986, %v943, %v825
        %v990 = vunpack.c.l.bf16 %v933
        %v991 = vunpack.c.h.bf16 %v933
        %v992 = vunpack.c.l.bf16 %v934
        %v993 = vunpack.c.l.bf16 %v987
        %v994 = vunpack.c.l.bf16 %v988
        %v995 = vunpack.c.l.bf16 %v989
        %v996 = vmax.f32 %v990, %v993
        %v997 = vmax.f32 %v991, %v994
        %v998 = vmax.f32 %v992, %v995
        %v999 = vpack.c.bf16 %v997, %v996
        %v1000 = vpack.c.bf16 %v998, %v998
        %1001 = vrot.lane.b32.xlu0 %v789, 126
        %v1002 = vpop.permute.xlu0 %1001
        %1003 = vrot.lane.b32.xlu0 %v790, 126
        %v1004 = vpop.permute.xlu0 %1003
        %1005 = vrot.lane.b32.xlu0 %v783, 126
        %v1006 = vpop.permute.xlu0 %1005
        %vm1007 = vcmask 1031168
        %v1008 = vsel %vm1007, %v1002, %v1004
        %v1009 = vsel %vm1007, %v1004, %v1006
        %v1014 = vsel %vm592, %v1006, %v1002
        %v1016 = vsel %vm596, 1, 0
        %v1017 = vsel %vm597, 1, 0
        %v1018 = vsel %vm598, 1, 0
        %v1019 = vperm.slane %v1016, 0
        %v1020 = vperm.slane %v1017, 0
        %v1021 = vperm.slane %v1018, 0
        %vm1022 = vcmp.eq.s32.totalorder %v1019, 1
        %vm1023 = vcmp.eq.s32.totalorder %v1020, 1
        %vm1024 = vcmp.eq.s32.totalorder %v1021, 1
        %vm1025 = vmpackc.low %vm1023, %vm1022
        %vm1026 = vmpackc.low %vm1024, %vm1024
        %v1027 = vsel %vm1025, 65537, 0
        %v1028 = vsel %vm1026, 65537, 0
        %v1029 = vperm.slane %v1027, 0
        %v1030 = vperm.slane %v1027, 4
        %v1031 = vperm.slane %v1028, 0
        %v1032 = vunpack.c.l.b16 %v1029
        %v1033 = vunpack.c.h.b16 %v1029
        %v1034 = vunpack.c.l.b16 0
        %v1035 = vunpack.c.h.b16 0
        %vm1036 = vcmp.ne.s32.totalorder %v1032, %v1034
        %vm1037 = vcmp.ne.s32.totalorder %v1033, %v1035
        %vm1038 = vmpackc.low %vm1037, %vm1036
        %v1039 = vunpack.c.l.b16 %v1030
        %v1040 = vunpack.c.h.b16 %v1030
        %v1041 = vunpack.c.l.b16 0
        %v1042 = vunpack.c.h.b16 0
        %vm1043 = vcmp.ne.s32.totalorder %v1039, %v1041
        %vm1044 = vcmp.ne.s32.totalorder %v1040, %v1042
        %vm1045 = vmpackc.low %vm1044, %vm1043
        %v1046 = vunpack.c.l.b16 %v1031
        %v1047 = vunpack.c.h.b16 %v1031
        %v1048 = vunpack.c.l.b16 0
        %v1049 = vunpack.c.h.b16 0
        %vm1050 = vcmp.ne.s32.totalorder %v1046, %v1048
        %vm1051 = vcmp.ne.s32.totalorder %v1047, %v1049
        %vm1052 = vmpackc.low %vm1051, %vm1050
        %v1053 = vsel %vm1038, %v1008, %v825
        %v1054 = vsel %vm1045, %v1009, %v825
        %v1055 = vsel %vm1052, %v1014, %v825
        %v1056 = vunpack.c.l.bf16 %v999
        %v1057 = vunpack.c.h.bf16 %v999
        %v1058 = vunpack.c.l.bf16 %v1000
        %v1059 = vunpack.c.l.bf16 %v1053
        %v1060 = vunpack.c.l.bf16 %v1054
        %v1061 = vunpack.c.l.bf16 %v1055
        %v1062 = vmax.f32 %v1056, %v1059
        %v1063 = vmax.f32 %v1057, %v1060
        %v1064 = vmax.f32 %v1058, %v1061
        %v1065 = vpack.c.bf16 %v1063, %v1062
        %v1066 = vpack.c.bf16 %v1064, %v1064
        %v1068 = vunpack.c.l.b16 %v1066
        %v1069 = vpack.c.b16 %v1068, %v1068
        %1070 = vrot.lane.b32.xlu0 %v1069, 16
        %v1071 = vpop.permute.xlu0 %1070
        %v1073 = vunpack.c.l.b16 %v1065
        %v1074 = vunpack.c.h.b16 %v1065
        %v1075 = vpack.c.b16 %v1073, %v1073
        %v1076 = vpack.c.b16 %v1074, %v1074
        %1077 = vrot.lane.b32.xlu0 %v1075, 16
        %v1078 = vpop.permute.xlu0 %1077
        %1079 = vrot.lane.b32.xlu0 %v1076, 16
        %v1080 = vpop.permute.xlu0 %1079
        %vm1081 = vcmask 130048
        %v1082 = vsel %vm1081, %v1078, %v1080
        %v1083 = vsel %vm1081, %v1080, %v1071
        %v1088 = vsel %vm535, %v1071, %v1078
        %v1090 = vsel %vm548, 1, 0
        %v1091 = vsel %vm549, 1, 0
        %v1092 = vsel %vm550, 1, 0
        %v1093 = vperm.slane %v1090, 0
        %v1094 = vperm.slane %v1091, 0
        %v1095 = vperm.slane %v1092, 0
        %vm1096 = vcmp.eq.s32.totalorder %v1093, 1
        %vm1097 = vcmp.eq.s32.totalorder %v1094, 1
        %vm1098 = vcmp.eq.s32.totalorder %v1095, 1
        %vm1099 = vmpackc.low %vm1097, %vm1096
        %vm1100 = vmpackc.low %vm1098, %vm1098
        %v1101 = vsel %vm1099, 65537, 0
        %v1102 = vsel %vm1100, 65537, 0
        %v1103 = vperm.slane %v1101, 0
        %v1104 = vperm.slane %v1101, 4
        %v1105 = vperm.slane %v1102, 0
        %v1106 = vunpack.c.l.b16 %v1103
        %v1107 = vunpack.c.h.b16 %v1103
        %v1108 = vunpack.c.l.b16 0
        %v1109 = vunpack.c.h.b16 0
        %vm1110 = vcmp.ne.s32.totalorder %v1106, %v1108
        %vm1111 = vcmp.ne.s32.totalorder %v1107, %v1109
        %vm1112 = vmpackc.low %vm1111, %vm1110
        %v1113 = vunpack.c.l.b16 %v1104
        %v1114 = vunpack.c.h.b16 %v1104
        %v1115 = vunpack.c.l.b16 0
        %v1116 = vunpack.c.h.b16 0
        %vm1117 = vcmp.ne.s32.totalorder %v1113, %v1115
        %vm1118 = vcmp.ne.s32.totalorder %v1114, %v1116
        %vm1119 = vmpackc.low %vm1118, %vm1117
        %v1120 = vunpack.c.l.b16 %v1105
        %v1121 = vunpack.c.h.b16 %v1105
        %v1122 = vunpack.c.l.b16 0
        %v1123 = vunpack.c.h.b16 0
        %vm1124 = vcmp.ne.s32.totalorder %v1120, %v1122
        %vm1125 = vcmp.ne.s32.totalorder %v1121, %v1123
        %vm1126 = vmpackc.low %vm1125, %vm1124
        %v1127 = vsel %vm1112, %v1088, %v825
        %v1128 = vsel %vm1119, %v1082, %v825
        %v1129 = vsel %vm1126, %v1083, %v825
        %v1130 = vunpack.c.l.bf16 %v1065
        %v1131 = vunpack.c.h.bf16 %v1065
        %v1132 = vunpack.c.l.bf16 %v1066
        %v1133 = vunpack.c.l.bf16 %v1127
        %v1134 = vunpack.c.l.bf16 %v1128
        %v1135 = vunpack.c.l.bf16 %v1129
        %v1136 = vmax.f32 %v1130, %v1133
        %v1137 = vmax.f32 %v1131, %v1134
        %v1138 = vmax.f32 %v1132, %v1135
        %v1139 = vpack.c.bf16 %v1137, %v1136
        %v1140 = vpack.c.bf16 %v1138, %v1138
        %1141 = vrot.lane.b32.xlu0 %v1075, 112
        %v1142 = vpop.permute.xlu0 %1141
        %1143 = vrot.lane.b32.xlu0 %v1076, 112
        %v1144 = vpop.permute.xlu0 %1143
        %1145 = vrot.lane.b32.xlu0 %v1069, 112
        %v1146 = vpop.permute.xlu0 %1145
        %vm1147 = vcmask 916480
        %v1148 = vsel %vm1147, %v1142, %v1144
        %v1149 = vsel %vm1147, %v1144, %v1146
        %v1154 = vsel %vm557, %v1146, %v1142
        %v1156 = vsel %vm570, 1, 0
        %v1157 = vsel %vm571, 1, 0
        %v1158 = vsel %vm572, 1, 0
        %v1159 = vperm.slane %v1156, 0
        %v1160 = vperm.slane %v1157, 0
        %v1161 = vperm.slane %v1158, 0
        %vm1162 = vcmp.eq.s32.totalorder %v1159, 1
        %vm1163 = vcmp.eq.s32.totalorder %v1160, 1
        %vm1164 = vcmp.eq.s32.totalorder %v1161, 1
        %vm1165 = vmpackc.low %vm1163, %vm1162
        %vm1166 = vmpackc.low %vm1164, %vm1164
        %v1167 = vsel %vm1165, 65537, 0
        %v1168 = vsel %vm1166, 65537, 0
        %v1169 = vperm.slane %v1167, 0
        %v1170 = vperm.slane %v1167, 4
        %v1171 = vperm.slane %v1168, 0
        %v1172 = vunpack.c.l.b16 %v1169
        %v1173 = vunpack.c.h.b16 %v1169
        %v1174 = vunpack.c.l.b16 0
        %v1175 = vunpack.c.h.b16 0
        %vm1176 = vcmp.ne.s32.totalorder %v1172, %v1174
        %vm1177 = vcmp.ne.s32.totalorder %v1173, %v1175
        %vm1178 = vmpackc.low %vm1177, %vm1176
        %v1179 = vunpack.c.l.b16 %v1170
        %v1180 = vunpack.c.h.b16 %v1170
        %v1181 = vunpack.c.l.b16 0
        %v1182 = vunpack.c.h.b16 0
        %vm1183 = vcmp.ne.s32.totalorder %v1179, %v1181
        %vm1184 = vcmp.ne.s32.totalorder %v1180, %v1182
        %vm1185 = vmpackc.low %vm1184, %vm1183
        %v1186 = vunpack.c.l.b16 %v1171
        %v1187 = vunpack.c.h.b16 %v1171
        %v1188 = vunpack.c.l.b16 0
        %v1189 = vunpack.c.h.b16 0
        %vm1190 = vcmp.ne.s32.totalorder %v1186, %v1188
        %vm1191 = vcmp.ne.s32.totalorder %v1187, %v1189
        %vm1192 = vmpackc.low %vm1191, %vm1190
        %v1193 = vsel %vm1178, %v1148, %v825
        %v1194 = vsel %vm1185, %v1149, %v825
        %v1195 = vsel %vm1192, %v1154, %v825
        %v1196 = vunpack.c.l.bf16 %v1139
        %v1197 = vunpack.c.h.bf16 %v1139
        %v1198 = vunpack.c.l.bf16 %v1140
        %v1199 = vunpack.c.l.bf16 %v1193
        %v1200 = vunpack.c.l.bf16 %v1194
        %v1201 = vunpack.c.l.bf16 %v1195
        %v1202 = vmax.f32 %v1196, %v1199
        %v1203 = vmax.f32 %v1197, %v1200
        %v1204 = vmax.f32 %v1198, %v1201
        %v1205 = vpack.c.bf16 %v1203, %v1202
        %v1206 = vpack.c.bf16 %v1204, %v1204
        %1207 = vrot.lane.b32.xlu0 %v1069, 32
        %v1208 = vpop.permute.xlu0 %1207
        %1209 = vrot.lane.b32.xlu0 %v1075, 32
        %v1210 = vpop.permute.xlu0 %1209
        %1211 = vrot.lane.b32.xlu0 %v1076, 32
        %v1212 = vpop.permute.xlu0 %1211
        %vm1213 = vcmask 261120
        %v1214 = vsel %vm1213, %v1210, %v1212
        %v1215 = vsel %vm1213, %v1212, %v1208
        %v1220 = vsel %vm605, %v1208, %v1210
        %v1222 = vsel %vm618, 1, 0
        %v1223 = vsel %vm619, 1, 0
        %v1224 = vsel %vm620, 1, 0
        %v1225 = vperm.slane %v1222, 0
        %v1226 = vperm.slane %v1223, 0
        %v1227 = vperm.slane %v1224, 0
        %vm1228 = vcmp.eq.s32.totalorder %v1225, 1
        %vm1229 = vcmp.eq.s32.totalorder %v1226, 1
        %vm1230 = vcmp.eq.s32.totalorder %v1227, 1
        %vm1231 = vmpackc.low %vm1229, %vm1228
        %vm1232 = vmpackc.low %vm1230, %vm1230
        %v1233 = vsel %vm1231, 65537, 0
        %v1234 = vsel %vm1232, 65537, 0
        %v1235 = vperm.slane %v1233, 0
        %v1236 = vperm.slane %v1233, 4
        %v1237 = vperm.slane %v1234, 0
        %v1238 = vunpack.c.l.b16 %v1235
        %v1239 = vunpack.c.h.b16 %v1235
        %v1240 = vunpack.c.l.b16 0
        %v1241 = vunpack.c.h.b16 0
        %vm1242 = vcmp.ne.s32.totalorder %v1238, %v1240
        %vm1243 = vcmp.ne.s32.totalorder %v1239, %v1241
        %vm1244 = vmpackc.low %vm1243, %vm1242
        %v1245 = vunpack.c.l.b16 %v1236
        %v1246 = vunpack.c.h.b16 %v1236
        %v1247 = vunpack.c.l.b16 0
        %v1248 = vunpack.c.h.b16 0
        %vm1249 = vcmp.ne.s32.totalorder %v1245, %v1247
        %vm1250 = vcmp.ne.s32.totalorder %v1246, %v1248
        %vm1251 = vmpackc.low %vm1250, %vm1249
        %v1252 = vunpack.c.l.b16 %v1237
        %v1253 = vunpack.c.h.b16 %v1237
        %v1254 = vunpack.c.l.b16 0
        %v1255 = vunpack.c.h.b16 0
        %vm1256 = vcmp.ne.s32.totalorder %v1252, %v1254
        %vm1257 = vcmp.ne.s32.totalorder %v1253, %v1255
        %vm1258 = vmpackc.low %vm1257, %vm1256
        %v1259 = vsel %vm1244, %v1220, %v825
        %v1260 = vsel %vm1251, %v1214, %v825
        %v1261 = vsel %vm1258, %v1215, %v825
        %v1262 = vunpack.c.l.bf16 %v1205
        %v1263 = vunpack.c.h.bf16 %v1205
        %v1264 = vunpack.c.l.bf16 %v1206
        %v1265 = vunpack.c.l.bf16 %v1259
        %v1266 = vunpack.c.l.bf16 %v1260
        %v1267 = vunpack.c.l.bf16 %v1261
        %v1268 = vmax.f32 %v1262, %v1265
        %v1269 = vmax.f32 %v1263, %v1266
        %v1270 = vmax.f32 %v1264, %v1267
        %v1271 = vpack.c.bf16 %v1269, %v1268
        %v1272 = vpack.c.bf16 %v1270, %v1270
        %1273 = vrot.lane.b32.xlu0 %v1075, 96
        %v1274 = vpop.permute.xlu0 %1273
        %1275 = vrot.lane.b32.xlu0 %v1076, 96
        %v1276 = vpop.permute.xlu0 %1275
        %1277 = vrot.lane.b32.xlu0 %v1069, 96
        %v1278 = vpop.permute.xlu0 %1277
        %vm1279 = vcmask 785408
        %v1280 = vsel %vm1279, %v1274, %v1276
        %v1281 = vsel %vm1279, %v1276, %v1278
        %v1286 = vsel %vm627, %v1278, %v1274
        %v1288 = vsel %vm640, 1, 0
        %v1289 = vsel %vm641, 1, 0
        %v1290 = vsel %vm642, 1, 0
        %v1291 = vperm.slane %v1288, 0
        %v1292 = vperm.slane %v1289, 0
        %v1293 = vperm.slane %v1290, 0
        %vm1294 = vcmp.eq.s32.totalorder %v1291, 1
        %vm1295 = vcmp.eq.s32.totalorder %v1292, 1
        %vm1296 = vcmp.eq.s32.totalorder %v1293, 1
        %vm1297 = vmpackc.low %vm1295, %vm1294
        %vm1298 = vmpackc.low %vm1296, %vm1296
        %v1299 = vsel %vm1297, 65537, 0
        %v1300 = vsel %vm1298, 65537, 0
        %v1301 = vperm.slane %v1299, 0
        %v1302 = vperm.slane %v1299, 4
        %v1303 = vperm.slane %v1300, 0
        %v1304 = vunpack.c.l.b16 %v1301
        %v1305 = vunpack.c.h.b16 %v1301
        %v1306 = vunpack.c.l.b16 0
        %v1307 = vunpack.c.h.b16 0
        %vm1308 = vcmp.ne.s32.totalorder %v1304, %v1306
        %vm1309 = vcmp.ne.s32.totalorder %v1305, %v1307
        %vm1310 = vmpackc.low %vm1309, %vm1308
        %v1311 = vunpack.c.l.b16 %v1302
        %v1312 = vunpack.c.h.b16 %v1302
        %v1313 = vunpack.c.l.b16 0
        %v1314 = vunpack.c.h.b16 0
        %vm1315 = vcmp.ne.s32.totalorder %v1311, %v1313
        %vm1316 = vcmp.ne.s32.totalorder %v1312, %v1314
        %vm1317 = vmpackc.low %vm1316, %vm1315
        %v1318 = vunpack.c.l.b16 %v1303
        %v1319 = vunpack.c.h.b16 %v1303
        %v1320 = vunpack.c.l.b16 0
        %v1321 = vunpack.c.h.b16 0
        %vm1322 = vcmp.ne.s32.totalorder %v1318, %v1320
        %vm1323 = vcmp.ne.s32.totalorder %v1319, %v1321
        %vm1324 = vmpackc.low %vm1323, %vm1322
        %v1325 = vsel %vm1310, %v1280, %v825
        %v1326 = vsel %vm1317, %v1281, %v825
        %v1327 = vsel %vm1324, %v1286, %v825
        %v1328 = vunpack.c.l.bf16 %v1271
        %v1329 = vunpack.c.h.bf16 %v1271
        %v1330 = vunpack.c.l.bf16 %v1272
        %v1331 = vunpack.c.l.bf16 %v1325
        %v1332 = vunpack.c.l.bf16 %v1326
        %v1333 = vunpack.c.l.bf16 %v1327
        %v1334 = vmax.f32 %v1328, %v1331
        %v1335 = vmax.f32 %v1329, %v1332
        %v1336 = vmax.f32 %v1330, %v1333
        %v1337 = vpack.c.bf16 %v1335, %v1334
        %v1338 = vpack.c.bf16 %v1336, %v1336
        %s1339 = scalar_lea.vmem %s7, 4
        %v1340 = vld [vmem:[%s1339] sm:$0xf]
        %v1342 = vunpack.c.h.b16 %v1337
        %v1343 = vpack.c.b16 %v1342, %v1342
        %v1345 = vsel %vm579, %v1340, 0
        %vm1347 = vcmask 1040384
        %v1349 = vsel %vm1347, %v1343, 0
        %1351 = vmatpush.bf16.msra.mxu0 0
        %1352 = vmatpush.bf16.msra.mxu0 0
        %1353 = vmatpush.bf16.msra.mxu0 0
        %1354 = vmatpush.bf16.msra.mxu0 0
        %1355 = vmatpush.bf16.msra.mxu0 0
        %1356 = vmatpush.bf16.msra.mxu0 0
        %1357 = vmatpush.bf16.msra.mxu0 0
        %1358 = vmatpush.bf16.msra.mxu0 %v1349
        %1359 = vmatmul.bf16.gmra.mxu0 %v1345
        %v1360 = vpop.f32.mrf.mxu0
        %v1361 = vadd.f32 0.0, %v1360
        %v1362 = vpop.f32.mrf.mxu0
        %1363 = vdwg.mxu0
        %v1365 = vsel %vm579, %v780, 0
        %v1368 = vsel %vm1347, %v790, 0
        %1370 = vmatpush.bf16.msra.mxu0 0
        %1371 = vmatpush.bf16.msra.mxu0 0
        %1372 = vmatpush.bf16.msra.mxu0 0
        %1373 = vmatpush.bf16.msra.mxu0 0
        %1374 = vmatpush.bf16.msra.mxu0 0
        %1375 = vmatpush.bf16.msra.mxu0 0
        %1376 = vmatpush.bf16.msra.mxu0 0
        %1377 = vmatpush.bf16.msra.mxu0 %v1368
        %1378 = vmatmul.bf16.gmra.mxu0 %v1365
        %v1379 = vpop.f32.mrf.mxu0
        %v1380 = vadd.f32 %v1361, %v1379
        %v1381 = vpop.f32.mrf.mxu0
        %1382 = vdwg.mxu0
        %v1384 = vunpack.c.l.b16 %v1338
        %v1385 = vpack.c.b16 %v1384, %v1384
        %1386 = vrot.lane.b32.xlu0 %v1385, 1
        %v1387 = vpop.permute.xlu0 %1386
        %v1388 = vunpack.c.l.b16 %v1337
        %v1389 = vpack.c.b16 %v1388, %v1388
        %1390 = vrot.lane.b32.xlu0 %v1389, 1
        %v1391 = vpop.permute.xlu0 %1390
        %1392 = vrot.lane.b32.xlu0 %v1343, 1
        %v1393 = vpop.permute.xlu0 %1392
        %v1394 = vsel %vm795, %v1391, %v1393
        %v1395 = vsel %vm795, %v1393, %v1387
        %v1400 = vsel %vm509, %v1387, %v1391
        %v1402 = vsel %vm840, %v1400, %v825
        %v1403 = vsel %vm847, %v1394, %v825
        %v1404 = vsel %vm854, %v1395, %v825
        %v1405 = vunpack.c.l.bf16 %v1337
        %v1406 = vunpack.c.h.bf16 %v1337
        %v1407 = vunpack.c.l.bf16 %v1338
        %v1408 = vunpack.c.l.bf16 %v1402
        %v1409 = vunpack.c.l.bf16 %v1403
        %v1410 = vunpack.c.l.bf16 %v1404
        %v1411 = vmax.f32 %v1405, %v1408
        %v1412 = vmax.f32 %v1406, %v1409
        %v1413 = vmax.f32 %v1407, %v1410
        %v1414 = vpack.c.bf16 %v1412, %v1411
        %v1415 = vpack.c.bf16 %v1413, %v1413
        %1416 = vrot.lane.b32.xlu0 %v1389, 127
        %v1417 = vpop.permute.xlu0 %1416
        %1418 = vrot.lane.b32.xlu0 %v1343, 127
        %v1419 = vpop.permute.xlu0 %1418
        %1420 = vrot.lane.b32.xlu0 %v1385, 127
        %v1421 = vpop.permute.xlu0 %1420
        %v1422 = vsel %vm875, %v1417, %v1419
        %v1423 = vsel %vm875, %v1419, %v1421
        %v1428 = vsel %vm522, %v1421, %v1417
        %v1430 = vsel %vm906, %v1422, %v825
        %v1431 = vsel %vm913, %v1423, %v825
        %v1432 = vsel %vm920, %v1428, %v825
        %v1433 = vunpack.c.l.bf16 %v1414
        %v1434 = vunpack.c.h.bf16 %v1414
        %v1435 = vunpack.c.l.bf16 %v1415
        %v1436 = vunpack.c.l.bf16 %v1430
        %v1437 = vunpack.c.l.bf16 %v1431
        %v1438 = vunpack.c.l.bf16 %v1432
        %v1439 = vmax.f32 %v1433, %v1436
        %v1440 = vmax.f32 %v1434, %v1437
        %v1441 = vmax.f32 %v1435, %v1438
        %v1442 = vpack.c.bf16 %v1440, %v1439
        %v1443 = vpack.c.bf16 %v1441, %v1441
        %1444 = vrot.lane.b32.xlu0 %v1385, 2
        %v1445 = vpop.permute.xlu0 %1444
        %1446 = vrot.lane.b32.xlu0 %v1389, 2
        %v1447 = vpop.permute.xlu0 %1446
        %1448 = vrot.lane.b32.xlu0 %v1343, 2
        %v1449 = vpop.permute.xlu0 %1448
        %v1450 = vsel %vm941, %v1447, %v1449
        %v1451 = vsel %vm941, %v1449, %v1445
        %v1456 = vsel %vm579, %v1445, %v1447
        %v1458 = vsel %vm972, %v1456, %v825
        %v1459 = vsel %vm979, %v1450, %v825
        %v1460 = vsel %vm986, %v1451, %v825
        %v1461 = vunpack.c.l.bf16 %v1442
        %v1462 = vunpack.c.h.bf16 %v1442
        %v1463 = vunpack.c.l.bf16 %v1443
        %v1464 = vunpack.c.l.bf16 %v1458
        %v1465 = vunpack.c.l.bf16 %v1459
        %v1466 = vunpack.c.l.bf16 %v1460
        %v1467 = vmax.f32 %v1461, %v1464
        %v1468 = vmax.f32 %v1462, %v1465
        %v1469 = vmax.f32 %v1463, %v1466
        %v1470 = vpack.c.bf16 %v1468, %v1467
        %v1471 = vpack.c.bf16 %v1469, %v1469
        %1472 = vrot.lane.b32.xlu0 %v1389, 126
        %v1473 = vpop.permute.xlu0 %1472
        %1474 = vrot.lane.b32.xlu0 %v1343, 126
        %v1475 = vpop.permute.xlu0 %1474
        %1476 = vrot.lane.b32.xlu0 %v1385, 126
        %v1477 = vpop.permute.xlu0 %1476
        %v1478 = vsel %vm1007, %v1473, %v1475
        %v1479 = vsel %vm1007, %v1475, %v1477
        %v1484 = vsel %vm592, %v1477, %v1473
        %v1486 = vsel %vm1038, %v1478, %v825
        %v1487 = vsel %vm1045, %v1479, %v825
        %v1488 = vsel %vm1052, %v1484, %v825
        %v1489 = vunpack.c.l.bf16 %v1470
        %v1490 = vunpack.c.h.bf16 %v1470
        %v1491 = vunpack.c.l.bf16 %v1471
        %v1492 = vunpack.c.l.bf16 %v1486
        %v1493 = vunpack.c.l.bf16 %v1487
        %v1494 = vunpack.c.l.bf16 %v1488
        %v1495 = vmax.f32 %v1489, %v1492
        %v1496 = vmax.f32 %v1490, %v1493
        %v1497 = vmax.f32 %v1491, %v1494
        %v1498 = vpack.c.bf16 %v1496, %v1495
        %v1499 = vpack.c.bf16 %v1497, %v1497
        %v1501 = vunpack.c.l.b16 %v1499
        %v1502 = vpack.c.b16 %v1501, %v1501
        %1503 = vrot.lane.b32.xlu0 %v1502, 16
        %v1504 = vpop.permute.xlu0 %1503
        %v1506 = vunpack.c.l.b16 %v1498
        %v1507 = vunpack.c.h.b16 %v1498
        %v1508 = vpack.c.b16 %v1506, %v1506
        %v1509 = vpack.c.b16 %v1507, %v1507
        %1510 = vrot.lane.b32.xlu0 %v1508, 16
        %v1511 = vpop.permute.xlu0 %1510
        %1512 = vrot.lane.b32.xlu0 %v1509, 16
        %v1513 = vpop.permute.xlu0 %1512
        %v1514 = vsel %vm1081, %v1511, %v1513
        %v1515 = vsel %vm1081, %v1513, %v1504
        %v1520 = vsel %vm535, %v1504, %v1511
        %v1522 = vsel %vm1112, %v1520, %v825
        %v1523 = vsel %vm1119, %v1514, %v825
        %v1524 = vsel %vm1126, %v1515, %v825
        %v1525 = vunpack.c.l.bf16 %v1498
        %v1526 = vunpack.c.h.bf16 %v1498
        %v1527 = vunpack.c.l.bf16 %v1499
        %v1528 = vunpack.c.l.bf16 %v1522
        %v1529 = vunpack.c.l.bf16 %v1523
        %v1530 = vunpack.c.l.bf16 %v1524
        %v1531 = vmax.f32 %v1525, %v1528
        %v1532 = vmax.f32 %v1526, %v1529
        %v1533 = vmax.f32 %v1527, %v1530
        %v1534 = vpack.c.bf16 %v1532, %v1531
        %v1535 = vpack.c.bf16 %v1533, %v1533
        %1536 = vrot.lane.b32.xlu0 %v1508, 112
        %v1537 = vpop.permute.xlu0 %1536
        %1538 = vrot.lane.b32.xlu0 %v1509, 112
        %v1539 = vpop.permute.xlu0 %1538
        %1540 = vrot.lane.b32.xlu0 %v1502, 112
        %v1541 = vpop.permute.xlu0 %1540
        %v1542 = vsel %vm1147, %v1537, %v1539
        %v1543 = vsel %vm1147, %v1539, %v1541
        %v1548 = vsel %vm557, %v1541, %v1537
        %v1550 = vsel %vm1178, %v1542, %v825
        %v1551 = vsel %vm1185, %v1543, %v825
        %v1552 = vsel %vm1192, %v1548, %v825
        %v1553 = vunpack.c.l.bf16 %v1534
        %v1554 = vunpack.c.h.bf16 %v1534
        %v1555 = vunpack.c.l.bf16 %v1535
        %v1556 = vunpack.c.l.bf16 %v1550
        %v1557 = vunpack.c.l.bf16 %v1551
        %v1558 = vunpack.c.l.bf16 %v1552
        %v1559 = vmax.f32 %v1553, %v1556
        %v1560 = vmax.f32 %v1554, %v1557
        %v1561 = vmax.f32 %v1555, %v1558
        %v1562 = vpack.c.bf16 %v1560, %v1559
        %v1563 = vpack.c.bf16 %v1561, %v1561
        %1564 = vrot.lane.b32.xlu0 %v1502, 32
        %v1565 = vpop.permute.xlu0 %1564
        %1566 = vrot.lane.b32.xlu0 %v1508, 32
        %v1567 = vpop.permute.xlu0 %1566
        %1568 = vrot.lane.b32.xlu0 %v1509, 32
        %v1569 = vpop.permute.xlu0 %1568
        %v1570 = vsel %vm1213, %v1567, %v1569
        %v1571 = vsel %vm1213, %v1569, %v1565
        %v1576 = vsel %vm605, %v1565, %v1567
        %v1578 = vsel %vm1244, %v1576, %v825
        %v1579 = vsel %vm1251, %v1570, %v825
        %v1580 = vsel %vm1258, %v1571, %v825
        %v1581 = vunpack.c.l.bf16 %v1562
        %v1582 = vunpack.c.h.bf16 %v1562
        %v1583 = vunpack.c.l.bf16 %v1563
        %v1584 = vunpack.c.l.bf16 %v1578
        %v1585 = vunpack.c.l.bf16 %v1579
        %v1586 = vunpack.c.l.bf16 %v1580
        %v1587 = vmax.f32 %v1581, %v1584
        %v1588 = vmax.f32 %v1582, %v1585
        %v1589 = vmax.f32 %v1583, %v1586
        %v1590 = vpack.c.bf16 %v1588, %v1587
        %v1591 = vpack.c.bf16 %v1589, %v1589
        %1592 = vrot.lane.b32.xlu0 %v1508, 96
        %v1593 = vpop.permute.xlu0 %1592
        %1594 = vrot.lane.b32.xlu0 %v1509, 96
        %v1595 = vpop.permute.xlu0 %1594
        %1596 = vrot.lane.b32.xlu0 %v1502, 96
        %v1597 = vpop.permute.xlu0 %1596
        %v1598 = vsel %vm1279, %v1593, %v1595
        %v1599 = vsel %vm1279, %v1595, %v1597
        %v1604 = vsel %vm627, %v1597, %v1593
        %v1606 = vsel %vm1310, %v1598, %v825
        %v1607 = vsel %vm1317, %v1599, %v825
        %v1608 = vsel %vm1324, %v1604, %v825
        %v1609 = vunpack.c.l.bf16 %v1590
        %v1610 = vunpack.c.h.bf16 %v1590
        %v1611 = vunpack.c.l.bf16 %v1591
        %v1612 = vunpack.c.l.bf16 %v1606
        %v1613 = vunpack.c.l.bf16 %v1607
        %v1614 = vunpack.c.l.bf16 %v1608
        %v1615 = vmax.f32 %v1609, %v1612
        %v1616 = vmax.f32 %v1610, %v1613
        %v1617 = vmax.f32 %v1611, %v1614
        %v1618 = vpack.c.bf16 %v1616, %v1615
        %v1619 = vpack.c.bf16 %v1617, %v1617
        %s1620 = scalar_lea.vmem %s7, 8
        %v1621 = vld [vmem:[%s1620] sm:$0xf]
        %v1623 = vunpack.c.h.b16 %v1618
        %v1624 = vpack.c.b16 %v1623, %v1623
        %v1626 = vsel %vm579, %v1621, 0
        %v1629 = vsel %vm1347, %v1624, 0
        %1631 = vmatpush.bf16.msra.mxu0 0
        %1632 = vmatpush.bf16.msra.mxu0 0
        %1633 = vmatpush.bf16.msra.mxu0 0
        %1634 = vmatpush.bf16.msra.mxu0 0
        %1635 = vmatpush.bf16.msra.mxu0 0
        %1636 = vmatpush.bf16.msra.mxu0 0
        %1637 = vmatpush.bf16.msra.mxu0 0
        %1638 = vmatpush.bf16.msra.mxu0 %v1629
        %1639 = vmatmul.bf16.gmra.mxu0 %v1626
        %v1640 = vpop.f32.mrf.mxu0
        %v1641 = vadd.f32 0.0, %v1640
        %v1642 = vpop.f32.mrf.mxu0
        %1643 = vdwg.mxu0
        %v1644 = vadd.f32 %v1380, %v1641
        %v1646 = vunpack.c.l.b16 %v1619
        %v1647 = vpack.c.b16 %v1646, %v1646
        %1648 = vrot.lane.b32.xlu0 %v1647, 1
        %v1649 = vpop.permute.xlu0 %1648
        %v1650 = vunpack.c.l.b16 %v1618
        %v1651 = vpack.c.b16 %v1650, %v1650
        %1652 = vrot.lane.b32.xlu0 %v1651, 1
        %v1653 = vpop.permute.xlu0 %1652
        %1654 = vrot.lane.b32.xlu0 %v1624, 1
        %v1655 = vpop.permute.xlu0 %1654
        %v1656 = vsel %vm795, %v1653, %v1655
        %v1657 = vsel %vm795, %v1655, %v1649
        %v1662 = vsel %vm509, %v1649, %v1653
        %v1664 = vsel %vm840, %v1662, %v825
        %v1665 = vsel %vm847, %v1656, %v825
        %v1666 = vsel %vm854, %v1657, %v825
        %v1667 = vunpack.c.l.bf16 %v1618
        %v1668 = vunpack.c.h.bf16 %v1618
        %v1669 = vunpack.c.l.bf16 %v1619
        %v1670 = vunpack.c.l.bf16 %v1664
        %v1671 = vunpack.c.l.bf16 %v1665
        %v1672 = vunpack.c.l.bf16 %v1666
        %v1673 = vmax.f32 %v1667, %v1670
        %v1674 = vmax.f32 %v1668, %v1671
        %v1675 = vmax.f32 %v1669, %v1672
        %v1676 = vpack.c.bf16 %v1674, %v1673
        %v1677 = vpack.c.bf16 %v1675, %v1675
        %1678 = vrot.lane.b32.xlu0 %v1651, 127
        %v1679 = vpop.permute.xlu0 %1678
        %1680 = vrot.lane.b32.xlu0 %v1624, 127
        %v1681 = vpop.permute.xlu0 %1680
        %1682 = vrot.lane.b32.xlu0 %v1647, 127
        %v1683 = vpop.permute.xlu0 %1682
        %v1684 = vsel %vm875, %v1679, %v1681
        %v1685 = vsel %vm875, %v1681, %v1683
        %v1690 = vsel %vm522, %v1683, %v1679
        %v1692 = vsel %vm906, %v1684, %v825
        %v1693 = vsel %vm913, %v1685, %v825
        %v1694 = vsel %vm920, %v1690, %v825
        %v1695 = vunpack.c.l.bf16 %v1676
        %v1696 = vunpack.c.h.bf16 %v1676
        %v1697 = vunpack.c.l.bf16 %v1677
        %v1698 = vunpack.c.l.bf16 %v1692
        %v1699 = vunpack.c.l.bf16 %v1693
        %v1700 = vunpack.c.l.bf16 %v1694
        %v1701 = vmax.f32 %v1695, %v1698
        %v1702 = vmax.f32 %v1696, %v1699
        %v1703 = vmax.f32 %v1697, %v1700
        %v1704 = vpack.c.bf16 %v1702, %v1701
        %v1705 = vpack.c.bf16 %v1703, %v1703
        %1706 = vrot.lane.b32.xlu0 %v1647, 2
        %v1707 = vpop.permute.xlu0 %1706
        %1708 = vrot.lane.b32.xlu0 %v1651, 2
        %v1709 = vpop.permute.xlu0 %1708
        %1710 = vrot.lane.b32.xlu0 %v1624, 2
        %v1711 = vpop.permute.xlu0 %1710
        %v1712 = vsel %vm941, %v1709, %v1711
        %v1713 = vsel %vm941, %v1711, %v1707
        %v1718 = vsel %vm579, %v1707, %v1709
        %v1720 = vsel %vm972, %v1718, %v825
        %v1721 = vsel %vm979, %v1712, %v825
        %v1722 = vsel %vm986, %v1713, %v825
        %v1723 = vunpack.c.l.bf16 %v1704
        %v1724 = vunpack.c.h.bf16 %v1704
        %v1725 = vunpack.c.l.bf16 %v1705
        %v1726 = vunpack.c.l.bf16 %v1720
        %v1727 = vunpack.c.l.bf16 %v1721
        %v1728 = vunpack.c.l.bf16 %v1722
        %v1729 = vmax.f32 %v1723, %v1726
        %v1730 = vmax.f32 %v1724, %v1727
        %v1731 = vmax.f32 %v1725, %v1728
        %v1732 = vpack.c.bf16 %v1730, %v1729
        %v1733 = vpack.c.bf16 %v1731, %v1731
        %1734 = vrot.lane.b32.xlu0 %v1651, 126
        %v1735 = vpop.permute.xlu0 %1734
        %1736 = vrot.lane.b32.xlu0 %v1624, 126
        %v1737 = vpop.permute.xlu0 %1736
        %1738 = vrot.lane.b32.xlu0 %v1647, 126
        %v1739 = vpop.permute.xlu0 %1738
        %v1740 = vsel %vm1007, %v1735, %v1737
        %v1741 = vsel %vm1007, %v1737, %v1739
        %v1746 = vsel %vm592, %v1739, %v1735
        %v1748 = vsel %vm1038, %v1740, %v825
        %v1749 = vsel %vm1045, %v1741, %v825
        %v1750 = vsel %vm1052, %v1746, %v825
        %v1751 = vunpack.c.l.bf16 %v1732
        %v1752 = vunpack.c.h.bf16 %v1732
        %v1753 = vunpack.c.l.bf16 %v1733
        %v1754 = vunpack.c.l.bf16 %v1748
        %v1755 = vunpack.c.l.bf16 %v1749
        %v1756 = vunpack.c.l.bf16 %v1750
        %v1757 = vmax.f32 %v1751, %v1754
        %v1758 = vmax.f32 %v1752, %v1755
        %v1759 = vmax.f32 %v1753, %v1756
        %v1760 = vpack.c.bf16 %v1758, %v1757
        %v1761 = vpack.c.bf16 %v1759, %v1759
        %v1763 = vunpack.c.l.b16 %v1761
        %v1764 = vpack.c.b16 %v1763, %v1763
        %1765 = vrot.lane.b32.xlu0 %v1764, 16
        %v1766 = vpop.permute.xlu0 %1765
        %v1768 = vunpack.c.l.b16 %v1760
        %v1769 = vunpack.c.h.b16 %v1760
        %v1770 = vpack.c.b16 %v1768, %v1768
        %v1771 = vpack.c.b16 %v1769, %v1769
        %1772 = vrot.lane.b32.xlu0 %v1770, 16
        %v1773 = vpop.permute.xlu0 %1772
        %1774 = vrot.lane.b32.xlu0 %v1771, 16
        %v1775 = vpop.permute.xlu0 %1774
        %v1776 = vsel %vm1081, %v1773, %v1775
        %v1780 = vsel %vm535, %v1766, %v1773
        %v1782 = vsel %vm1112, %v1780, %v825
        %v1783 = vsel %vm1119, %v1776, %v825
        %v1784 = vunpack.c.l.bf16 %v1760
        %v1785 = vunpack.c.h.bf16 %v1760
        %v1786 = vunpack.c.l.bf16 %v1782
        %v1787 = vunpack.c.l.bf16 %v1783
        %v1788 = vmax.f32 %v1784, %v1786
        %v1789 = vmax.f32 %v1785, %v1787
        %v1790 = vpack.c.bf16 %v1789, %v1788
        %1791 = vrot.lane.b32.xlu0 %v1770, 112
        %v1792 = vpop.permute.xlu0 %1791
        %1793 = vrot.lane.b32.xlu0 %v1771, 112
        %v1794 = vpop.permute.xlu0 %1793
        %1795 = vrot.lane.b32.xlu0 %v1764, 112
        %v1796 = vpop.permute.xlu0 %1795
        %v1797 = vsel %vm1147, %v1792, %v1794
        %v1798 = vsel %vm1147, %v1794, %v1796
        %v1801 = vsel %vm1178, %v1797, %v825
        %v1802 = vsel %vm1185, %v1798, %v825
        %v1803 = vunpack.c.l.bf16 %v1790
        %v1804 = vunpack.c.h.bf16 %v1790
        %v1805 = vunpack.c.l.bf16 %v1801
        %v1806 = vunpack.c.l.bf16 %v1802
        %v1807 = vmax.f32 %v1803, %v1805
        %v1808 = vmax.f32 %v1804, %v1806
        %v1809 = vpack.c.bf16 %v1808, %v1807
        %1810 = vrot.lane.b32.xlu0 %v1764, 32
        %v1811 = vpop.permute.xlu0 %1810
        %1812 = vrot.lane.b32.xlu0 %v1770, 32
        %v1813 = vpop.permute.xlu0 %1812
        %1814 = vrot.lane.b32.xlu0 %v1771, 32
        %v1815 = vpop.permute.xlu0 %1814
        %v1816 = vsel %vm1213, %v1813, %v1815
        %v1820 = vsel %vm605, %v1811, %v1813
        %v1822 = vsel %vm1244, %v1820, %v825
        %v1823 = vsel %vm1251, %v1816, %v825
        %v1824 = vunpack.c.l.bf16 %v1809
        %v1825 = vunpack.c.h.bf16 %v1809
        %v1826 = vunpack.c.l.bf16 %v1822
        %v1827 = vunpack.c.l.bf16 %v1823
        %v1828 = vmax.f32 %v1824, %v1826
        %v1829 = vmax.f32 %v1825, %v1827
        %v1830 = vpack.c.bf16 %v1829, %v1828
        %1831 = vrot.lane.b32.xlu0 %v1770, 96
        %v1832 = vpop.permute.xlu0 %1831
        %1833 = vrot.lane.b32.xlu0 %v1771, 96
        %v1834 = vpop.permute.xlu0 %1833
        %1835 = vrot.lane.b32.xlu0 %v1764, 96
        %v1836 = vpop.permute.xlu0 %1835
        %v1837 = vsel %vm1279, %v1832, %v1834
        %v1838 = vsel %vm1279, %v1834, %v1836
        %v1841 = vsel %vm1310, %v1837, %v825
        %v1842 = vsel %vm1317, %v1838, %v825
        %v1843 = vunpack.c.l.bf16 %v1830
        %v1844 = vunpack.c.h.bf16 %v1830
        %v1845 = vunpack.c.l.bf16 %v1841
        %v1846 = vunpack.c.l.bf16 %v1842
        %v1847 = vmax.f32 %v1843, %v1845
        %v1848 = vmax.f32 %v1844, %v1846
        %v1849 = vpack.c.bf16 %v1848, %v1847
        %s1850 = scalar_lea.vmem %s7, 12
        %v1851 = vld [vmem:[%s1850] sm:$0xf]
        %v1853 = vunpack.c.h.b16 %v1849
        %v1854 = vpack.c.b16 %v1853, %v1853
        %v1856 = vsel %vm579, %v1851, 0
        %v1859 = vsel %vm1347, %v1854, 0
        %1861 = vmatpush.bf16.msra.mxu0 0
        %1862 = vmatpush.bf16.msra.mxu0 0
        %1863 = vmatpush.bf16.msra.mxu0 0
        %1864 = vmatpush.bf16.msra.mxu0 0
        %1865 = vmatpush.bf16.msra.mxu0 0
        %1866 = vmatpush.bf16.msra.mxu0 0
        %1867 = vmatpush.bf16.msra.mxu0 0
        %1868 = vmatpush.bf16.msra.mxu0 %v1859
        %1869 = vmatmul.bf16.gmra.mxu0 %v1856
        %v1870 = vpop.f32.mrf.mxu0
        %v1871 = vadd.f32 0.0, %v1870
        %v1872 = vpop.f32.mrf.mxu0
        %1873 = vdwg.mxu0
        %v1874 = vadd.f32 %v1644, %v1871
        %v1875 = vld [vmem:[%s8] sm:$0xff]
        %1877 = vset.pattern.permute.xlu0 0
        %1878 = vperm.xlu0 %1877, %v1875
        %v1879 = vpop.permute.xlu0 %1878
        %v1881 = vmul.f32 %v1874, %v1879
        %v1882 = vld [vmem:[%s9] sm:$0xff]
        %1884 = vset.pattern.permute.xlu0 0
        %1885 = vperm.xlu0 %1884, %v1882
        %v1886 = vpop.permute.xlu0 %1885
        %v1888 = vadd.f32 %v1881, %v1886
        %v1889 = vxor.u32 %v1888, 2147483648
        %v1890 = vmul.f32 %v1889, 1.442695
        %v1891 = vpow.pop %v1890
        %v1892 = vadd.f32 %v1891, 1.0
        %v1893 = vrcp.pop %v1892
        %v1894 = vmul.f32 %v1892, %v1893
        %v1895 = vsub.f32 1.0, %v1894
        %v1896 = vmul.f32 %v1893, %v1895
        %v1897 = vadd.f32 %v1893, %v1896
        %vm1898 = vweird.f32 %v1892
        %vm1899 = vweird.f32 %v1893
        %vm1900 = vmor %vm1898, %vm1899
        %v1901 = vsel %vm1900, %v1893, %v1897
        %v1902 = vand.u32 2147483647, %v1892
        %vm1903 = vcmp.eq.f32.partialorder %v1902, 8.507059e+37
        %v1904 = vand.u32 %v1892, 2147483648
        %v1905 = vor.u32 1.1754944e-38, %v1904
        %v1906 = vsel %vm1903, %v1905, %v1901
        %v1907 = vmul.f32 1.0, %v1906
        %v1908 = vmul.f32 %v1888, %v1907
        %1909 = vst [vmem:[%s450] sm:$0xff] %v1908
        %s1910 = sand.u32 %s289, 1
        %s1911 = scalar_lea.sflag [#allocation3], %s1910
        %s1912 = sand.u32 %s289, 1
        %s1913 = smul.addr %s1912, 8
        %s1914 = scalar_lea.vmem [#allocation2], %s1913
        // Predicated region
        $region61: #{tpu_custom_call.1} parent=59 // pred_check
          %p1915 = pneg %p299
        $region62: #{tpu_custom_call.1} parent=59 // pred_check_branch
          %1917 = sbr.rel (%p1915) target = $region64
        $region63: #{tpu_custom_call.1} parent=59 // pred_region
          %1919 = vsyncadd %s1911, 0
          %s1920 = smul.addr %s28, 2
          %s1921 = sadd.s32 %s29, %s1920
          %s1922 = smul.addr %s1921, 8
          %s1923 = scalar_lea.hbm %s10, %s1922
          %s1925 = sshll.u32 %s1914, 4
          %s1926 = int_to_ptr.vmem [resolvable:$true] %s1925
          %s1927 = sshll.u32 %s1923, 4
          %s1928 = int_to_ptr.hbm [resolvable:$true] %s1927
          %1930 = dma.vmem_to_hbm [thread:$0]  %s1926, 128, %s1928, %s1911
        $region64: #{tpu_custom_call.1} parent=59 // pred_fallthru
          _
      $region60: #{tpu_custom_call.1} parent=5 // pred_fallthru
        _
      %p1931 = scmp.le.s32.totalorder 2, %s19
      // Predicated region
      $region65: #{tpu_custom_call.1} parent=5 // pred_check
        %p1932 = pneg %p1931
      $region66: #{tpu_custom_call.1} parent=5 // pred_check_branch
        %1934 = sbr.rel (%p1932) target = $region68
      $region67: #{tpu_custom_call.1} parent=5 // pred_region
        %s1935 = ssub.s32 %s19, 2
        // Predicated region
        $region69: #{tpu_custom_call.1} parent=67 // pred_check
          %p1936 = pneg %p305
        $region70: #{tpu_custom_call.1} parent=67 // pred_check_branch
          %1938 = sbr.rel (%p1936) target = $region72
        $region71: #{tpu_custom_call.1} parent=67 // pred_region
          %s1939 = sand.u32 %s290, 1
          %s1940 = scalar_lea.sflag [#allocation3], %s1939
          %s1941 = sand.u32 %s290, 1
          %s1942 = smul.addr %s1941, 8
          %s1943 = scalar_lea.vmem [#allocation2], %s1942
          %1945 = dma.done %s1940, 128
        $region72: #{tpu_custom_call.1} parent=67 // pred_fallthru
          _
      $region68: #{tpu_custom_call.1} parent=5 // pred_fallthru
        _
    $region6: #{tpu_custom_call.1} parent=1 // loop_footer
      %s23 = sadd.s32 1, %s19
    $region7: #{tpu_custom_call.1} parent=1 // loop_footer_branch
      %18 = sbr.rel target = $region3
    $region8: #{tpu_custom_call.1} parent=1 // loop_exit
      _
    %1946 = vsyncpa [#allocation3], 1
    %s1947 = scalar_lea.sflag [#allocation3], 1
    %1948 = vsyncpa %s1947, 1

</llo_original>
